<compile_context>
chip_gen: v7x
topology: tpu7x:2x2x1
jax: 0.10.0
libtpu: 0.0.40
codegen_flags: <defaults>
</compile_context>

<pallas_src>
import functools

import jax
import jax.numpy as jnp
from jax.experimental import pallas as pl
from jax.experimental.pallas import tpu as pltpu
from jax.scipy.linalg import block_diag

# MXU operand dtype.  Keep f32 for the tiny demo; set to jnp.bfloat16 on v6e/v7x to halve
# weight/activation traffic (accumulation stays f32 via preferred_element_type and all
# softmax/sigmoid/mixture math below stays f32).
DOT_DTYPE = jnp.float32


# ----------------------------------------------------------------------------- kernels

def _extract_kernel(x_ref, w1_ref, b1_ref, w2_ref, b2_ref, w3_ref, b3_ref, o_ref, *,
                    num_tasks, task_expert_nums, n_share, h1, out_dims, has_share_gate):
    """Fused ExtractNet: packed expert MLPs + gates + softmax + gated mixture.

    w1: (Din, E_all*H1 + G_total)  -- expert layer-1 weights ++ all gate weights
    w2: (E_all*H1, E_all*H2)       -- block-diagonal expert layer-2
    w3: (E_all*H2, E_all*D)        -- block-diagonal expert layer-3
    o : (B, D*(T+1)) if has_share_gate else (B, T*D)
    """
    e_all = sum(task_expert_nums) + n_share
    eh1 = e_all * h1

    x = x_ref[...].astype(DOT_DTYPE)
    z1 = jnp.dot(x, w1_ref[...].astype(DOT_DTYPE),
                 preferred_element_type=jnp.float32) + b1_ref[...]
    a1 = jnp.maximum(z1[:, :eh1], 0.0)          # expert hidden-1 slab (B, E_all*H1)
    gate_logits = z1[:, eh1:]                   # all gate logits, no ReLU (B, G_total)

    a2 = jnp.dot(a1.astype(DOT_DTYPE), w2_ref[...].astype(DOT_DTYPE),
                 preferred_element_type=jnp.float32) + b2_ref[...]
    a2 = jnp.maximum(a2, 0.0)                   # (B, E_all*H2)
    experts = jnp.dot(a2.astype(DOT_DTYPE), w3_ref[...].astype(DOT_DTYPE),
                      preferred_element_type=jnp.float32) + b3_ref[...]  # (B, E_all*D)

    def softmax_mix(logits, expert_ids):
        m = jnp.max(logits, axis=-1, keepdims=True)
        e = jnp.exp(logits - m)
        g = e * pl.reciprocal(jnp.sum(e, axis=-1, keepdims=True), approx=True)
        mix = jnp.zeros((logits.shape[0], out_dims), jnp.float32)
        for j, eid in enumerate(expert_ids):
            mix = mix + g[:, j:j + 1] * experts[:, eid * out_dims:(eid + 1) * out_dims]
        return mix

    outs = []
    goff = 0
    toff = 0
    for t in range(num_tasks):
        n_gate = task_expert_nums[t] + n_share
        ids = (list(range(toff, toff + task_expert_nums[t]))        # this task's experts
               + list(range(e_all - n_share, e_all)))               # shared experts
        outs.append(softmax_mix(gate_logits[:, goff:goff + n_gate], ids))
        goff += n_gate
        toff += task_expert_nums[t]
    if has_share_gate:
        outs.append(softmax_mix(gate_logits[:, goff:goff + e_all], list(range(e_all))))
    o_ref[...] = jnp.concatenate(outs, axis=1)


def _towers_kernel(x_ref, w1_ref, b1_ref, w2_ref, b2_ref, w3_ref, b3_ref, o_ref):
    """All task towers fused via block-diagonal weights: (B, T*D) -> sigmoid (B, T)."""
    h = jnp.maximum(jnp.dot(x_ref[...].astype(DOT_DTYPE), w1_ref[...].astype(DOT_DTYPE),
                            preferred_element_type=jnp.float32) + b1_ref[...], 0.0)
    h = jnp.maximum(jnp.dot(h.astype(DOT_DTYPE), w2_ref[...].astype(DOT_DTYPE),
                            preferred_element_type=jnp.float32) + b2_ref[...], 0.0)
    y = jnp.dot(h.astype(DOT_DTYPE), w3_ref[...].astype(DOT_DTYPE),
                preferred_element_type=jnp.float32) + b3_ref[...]
    o_ref[...] = jax.nn.sigmoid(y)


# --------------------------------------------------------------------------- call glue

def _batch_block(batch, target=256):
    """Batch tile: full batch if small, else a divisor <= target (keeps (8,128) rule)."""
    if batch <= target:
        return batch
    for bm in (target, 128, 64, 32, 16, 8):
        if batch % bm == 0:
            return bm
    return batch


def _weight_spec(shape):
    nd = len(shape)
    return pl.BlockSpec(shape, lambda i, _nd=nd: (0,) * _nd)


def _call_batched(kernel, x, weights, out_cols):
    """pallas_call with a 1-D 'parallel' grid over the batch; weights fully resident."""
    batch = x.shape[0]
    bm = _batch_block(batch)
    in_specs = [pl.BlockSpec((bm, x.shape[1]), lambda i: (i, 0))]
    in_specs += [_weight_spec(w.shape) for w in weights]
    return pl.pallas_call(
        kernel,
        out_shape=jax.ShapeDtypeStruct((batch, out_cols), jnp.float32),
        grid=(batch // bm,),
        in_specs=in_specs,
        out_specs=pl.BlockSpec((bm, out_cols), lambda i: (i, 0)),
        compiler_params=pltpu.CompilerParams(dimension_semantics=("parallel",)),
    )(x, *weights)


def extract_forward(x, packed, *, num_tasks, task_expert_nums, n_share, hidden, out_dims,
                    has_share_gate):
    kernel = functools.partial(
        _extract_kernel, num_tasks=num_tasks, task_expert_nums=tuple(task_expert_nums),
        n_share=n_share, h1=hidden[0], out_dims=out_dims, has_share_gate=has_share_gate)
    out_cols = out_dims * (num_tasks + 1) if has_share_gate else out_dims * num_tasks
    return _call_batched(kernel, x, packed, out_cols)


# ---------------------------------------------------------------------- parameter init

def _init_linear(key, din, dout):
    """PyTorch-nn.Linear-style uniform init (deterministic via key)."""
    kw, kb = jax.random.split(key)
    bound = 1.0 / jnp.sqrt(jnp.float32(din))
    w = jax.random.uniform(kw, (din, dout), jnp.float32, -bound, bound)
    b = jax.random.uniform(kb, (1, dout), jnp.float32, -bound, bound)
    return w, b


def _init_mlp3(key, din, hidden, dout):
    k1, k2, k3 = jax.random.split(key, 3)
    w1, b1 = _init_linear(k1, din, hidden[0])
    w2, b2 = _init_linear(k2, hidden[0], hidden[1])
    w3, b3 = _init_linear(k3, hidden[1], dout)
    return (w1, b1, w2, b2, w3, b3)


def _init_extract_net(key, num_tasks, task_expert_num_list, share_net_expert_nums,
                      input_dims, out_dims, hidden):
    keys = jax.random.split(key, 2 * num_tasks + 2)
    params = {}
    ks = jax.random.split(keys[0], share_net_expert_nums)
    params["share_experts"] = [_init_mlp3(ks[i], input_dims, hidden, out_dims)
                               for i in range(share_net_expert_nums)]
    params["task_experts"] = []
    for t in range(num_tasks):
        kt = jax.random.split(keys[1 + t], task_expert_num_list[t])
        params["task_experts"].append(
            [_init_mlp3(kt[i], input_dims, hidden, out_dims)
             for i in range(task_expert_num_list[t])])
    params["task_gates"] = []
    for t in range(num_tasks):
        n_gate = task_expert_num_list[t] + share_net_expert_nums
        params["task_gates"].append(_init_linear(keys[1 + num_tasks + t], input_dims, n_gate))
    n_all = sum(task_expert_num_list) + share_net_expert_nums
    params["share_gate"] = _init_linear(keys[1 + 2 * num_tasks], input_dims, n_all)
    return params


def init_ple_params(key, cfg):
    keys = jax.random.split(key, 4)
    params = {}
    ke = jax.random.split(keys[0], cfg["dis_fea_num"])
    params["emb"] = [jax.random.normal(ke[i], (cfg["dis_feas_size"][i], cfg["embedding_size"]),
                                       jnp.float32)
                     for i in range(cfg["dis_fea_num"])]
    first_in = cfg["dis_fea_num"] * cfg["embedding_size"] + cfg["fea_num"] - cfg["dis_fea_num"]
    extract_out = cfg["out_dims"] * (cfg["num_tasks"] + 1)
    kl = jax.random.split(keys[1], cfg["ple_num"])
    layers = [_init_extract_net(kl[0], cfg["num_tasks"], cfg["task_expert_num_list"],
                                cfg["share_net_expert_nums"], first_in, cfg["out_dims"],
                                cfg["dnn_hidden_unit"])]
    for i in range(1, cfg["ple_num"]):
        layers.append(_init_extract_net(kl[i], cfg["num_tasks"], cfg["task_expert_num_list"],
                                        cfg["share_net_expert_nums"], extract_out,
                                        cfg["out_dims"], cfg["dnn_hidden_unit"]))
    params["ple_layers"] = layers
    params["out_cgc"] = _init_extract_net(keys[2], cfg["num_tasks"], cfg["task_expert_num_list"],
                                          cfg["share_net_expert_nums"], extract_out,
                                          cfg["out_dims"], cfg["dnn_hidden_unit"])
    kt = jax.random.split(keys[3], cfg["num_tasks"])
    params["towers"] = [_init_mlp3(kt[t], cfg["out_dims"], cfg["dnn_hidden_unit"], 1)
                        for t in range(cfg["num_tasks"])]
    return params


# --------------------------------------------------------------------- weight prepack

def _pack_extract(p, num_tasks, has_share_gate):
    """Pack an ExtractNet's per-expert/per-gate weights into the fused-kernel layout."""
    experts = []
    for t in range(num_tasks):
        experts.extend(p["task_experts"][t])
    experts.extend(p["share_experts"])

    gate_ws = [p["task_gates"][t][0] for t in range(num_tasks)]
    gate_bs = [p["task_gates"][t][1] for t in range(num_tasks)]
    if has_share_gate:
        gate_ws.append(p["share_gate"][0])
        gate_bs.append(p["share_gate"][1])

    w1p = jnp.concatenate([e[0] for e in experts] + gate_ws, axis=1)
    b1p = jnp.concatenate([e[1] for e in experts] + gate_bs, axis=1)
    w2p = block_diag(*[e[2] for e in experts])
    b2p = jnp.concatenate([e[3] for e in experts], axis=1)
    w3p = block_diag(*[e[4] for e in experts])
    b3p = jnp.concatenate([e[5] for e in experts], axis=1)
    return (w1p, b1p, w2p, b2p, w3p, b3p)


def _pack_towers(towers):
    w1 = block_diag(*[t[0] for t in towers])
    b1 = jnp.concatenate([t[1] for t in towers], axis=1)
    w2 = block_diag(*[t[2] for t in towers])
    b2 = jnp.concatenate([t[3] for t in towers], axis=1)
    w3 = block_diag(*[t[4] for t in towers])
    b3 = jnp.concatenate([t[5] for t in towers], axis=1)
    return (w1, b1, w2, b2, w3, b3)


def prepack_ple(params, cfg):
    packed = {"emb": params["emb"]}
    packed["ple_layers"] = [_pack_extract(layer, cfg["num_tasks"], has_share_gate=True)
                            for layer in params["ple_layers"]]
    packed["out_cgc"] = _pack_extract(params["out_cgc"], cfg["num_tasks"], has_share_gate=False)
    packed["towers"] = _pack_towers(params["towers"])
    return packed


# ------------------------------------------------------------------------------ forward

def ple_forward(X, packed, cfg):
    # discrete-feature embedding lookup (glue, plain JAX gather)
    embeds = []
    for i in range(cfg["dis_fea_num"]):
        idx = X[:, i].astype(jnp.int32)
        embeds.append(jnp.take(packed["emb"][i], idx, axis=0))
    h = jnp.concatenate(embeds + [X[:, cfg["dis_fea_num"]:]], axis=1)

    kw = dict(num_tasks=cfg["num_tasks"], task_expert_nums=cfg["task_expert_num_list"],
              n_share=cfg["share_net_expert_nums"], hidden=cfg["dnn_hidden_unit"],
              out_dims=cfg["out_dims"])

    for layer in packed["ple_layers"]:
        h = extract_forward(h, layer, has_share_gate=True, **kw)        # (B, D*(T+1))

    cgc = extract_forward(h, packed["out_cgc"], has_share_gate=False, **kw)  # (B, T*D) slab

    probs = _call_batched(_towers_kernel, cgc, packed["towers"], cfg["num_tasks"])  # (B, T)
    return probs[:, :, None]                                            # (B, T, 1)


# --------------------------------------------------------------------------------- main

if __name__ == "__main__":
    cfg = dict(
        dis_feas_size=[10, 10],
        dis_fea_num=2,
        fea_num=6,                 # 2 discrete + 4 continuous
        num_tasks=2,
        task_expert_num_list=[2, 2],
        share_net_expert_nums=2,
        out_dims=16,
        ple_num=2,
        dnn_hidden_unit=[32, 32],
        embedding_size=8,
    )

    key = jax.random.PRNGKey(0)
    k_param, k_idx, k_cont = jax.random.split(key, 3)
    params = init_ple_params(k_param, cfg)
    packed = prepack_ple(params, cfg)

    batch = 4
    dis = jax.random.randint(k_idx, (batch, cfg["dis_fea_num"]), 0, 10).astype(jnp.float32)
    cont = jax.random.normal(k_cont, (batch, cfg["fea_num"] - cfg["dis_fea_num"]), jnp.float32)
    X = jnp.concatenate([dis, cont], axis=1)                            # (B, fea_num)

    fwd = jax.jit(functools.partial(ple_forward, cfg=cfg))
    out = fwd(X, packed)
    out = jax.block_until_ready(out)

    assert out.shape == (batch, cfg["num_tasks"], 1), out.shape
    assert bool(jnp.all(jnp.isfinite(out)))
    assert bool(jnp.all((out >= 0.0) & (out <= 1.0)))
    print("KERNEL_OK")
</pallas_src>

<mosaic_0001>
module attributes {stable_mosaic.version = 11 : i64} {
  func.func @_extract_kernel(%arg0: i32, %arg1: memref<4x48xf32, #tpu.memory_space<vmem>>, %arg2: memref<48x206xf32, #tpu.memory_space<vmem>>, %arg3: memref<1x206xf32, #tpu.memory_space<vmem>>, %arg4: memref<192x192xf32, #tpu.memory_space<vmem>>, %arg5: memref<1x192xf32, #tpu.memory_space<vmem>>, %arg6: memref<192x96xf32, #tpu.memory_space<vmem>>, %arg7: memref<1x96xf32, #tpu.memory_space<vmem>>, %arg8: memref<4x48xf32, #tpu.memory_space<vmem>>) attributes {dimension_semantics = [#tpu.dimension_semantics<parallel>], iteration_bounds = array<i64: 1>, scalar_prefetch = 0 : i64, scratch_operands = 0 : i64, tpu.core_type = #tpu.core_type<tc>, window_params = [{transform_indices = @transform_0, window_bounds = array<i64: 4, 48>}, {pipeline_mode = #tpu.pipeline_mode<synchronous>, transform_indices = @transform_1, window_bounds = array<i64: 48, 206>}, {pipeline_mode = #tpu.pipeline_mode<synchronous>, transform_indices = @transform_2, window_bounds = array<i64: 1, 206>}, {pipeline_mode = #tpu.pipeline_mode<synchronous>, transform_indices = @transform_3, window_bounds = array<i64: 192, 192>}, {pipeline_mode = #tpu.pipeline_mode<synchronous>, transform_indices = @transform_4, window_bounds = array<i64: 1, 192>}, {pipeline_mode = #tpu.pipeline_mode<synchronous>, transform_indices = @transform_5, window_bounds = array<i64: 192, 96>}, {pipeline_mode = #tpu.pipeline_mode<synchronous>, transform_indices = @transform_6, window_bounds = array<i64: 1, 96>}, {transform_indices = @transform_7, window_bounds = array<i64: 4, 48>}]} {
    %c0 = arith.constant 0 : index
    %c0_0 = arith.constant 0 : index
    %0 = vector.load %arg1[%c0, %c0_0] : memref<4x48xf32, #tpu.memory_space<vmem>>, vector<4x48xf32>
    %c0_1 = arith.constant 0 : index
    %c0_2 = arith.constant 0 : index
    %1 = vector.load %arg2[%c0_1, %c0_2] : memref<48x206xf32, #tpu.memory_space<vmem>>, vector<48x206xf32>
    %cst = arith.constant dense<0.000000e+00> : vector<4x206xf32>
    %2 = tpu.matmul %0, %1, %cst {dimension_numbers = #tpu.dot_dimension_numbers<[1], [0], [0], [1], [0, 0, 1, 1], [], []>} : vector<4x48xf32>, vector<48x206xf32>, vector<4x206xf32> -> vector<4x206xf32>
    %c0_3 = arith.constant 0 : index
    %c0_4 = arith.constant 0 : index
    %3 = vector.load %arg3[%c0_3, %c0_4] : memref<1x206xf32, #tpu.memory_space<vmem>>, vector<1x206xf32>
    %4 = vector.broadcast %3 : vector<1x206xf32> to vector<4x206xf32>
    %5 = arith.addf %2, %4 : vector<4x206xf32>
    %6 = vector.extract_strided_slice %5 {offsets = [0, 0], sizes = [4, 192], strides = [1, 1]} : vector<4x206xf32> to vector<4x192xf32>
    %cst_5 = arith.constant 0.000000e+00 : f32
    %7 = vector.broadcast %cst_5 : f32 to vector<4x192xf32>
    %8 = arith.maximumf %6, %7 : vector<4x192xf32>
    %9 = vector.extract_strided_slice %5 {offsets = [0, 192], sizes = [4, 14], strides = [1, 1]} : vector<4x206xf32> to vector<4x14xf32>
    %c0_6 = arith.constant 0 : index
    %c0_7 = arith.constant 0 : index
    %10 = vector.load %arg4[%c0_6, %c0_7] : memref<192x192xf32, #tpu.memory_space<vmem>>, vector<192x192xf32>
    %cst_8 = arith.constant dense<0.000000e+00> : vector<4x192xf32>
    %11 = tpu.matmul %8, %10, %cst_8 {dimension_numbers = #tpu.dot_dimension_numbers<[1], [0], [0], [1], [0, 0, 1, 1], [], []>} : vector<4x192xf32>, vector<192x192xf32>, vector<4x192xf32> -> vector<4x192xf32>
    %c0_9 = arith.constant 0 : index
    %c0_10 = arith.constant 0 : index
    %12 = vector.load %arg5[%c0_9, %c0_10] : memref<1x192xf32, #tpu.memory_space<vmem>>, vector<1x192xf32>
    %13 = vector.broadcast %12 : vector<1x192xf32> to vector<4x192xf32>
    %14 = arith.addf %11, %13 : vector<4x192xf32>
    %cst_11 = arith.constant 0.000000e+00 : f32
    %15 = vector.broadcast %cst_11 : f32 to vector<4x192xf32>
    %16 = arith.maximumf %14, %15 : vector<4x192xf32>
    %c0_12 = arith.constant 0 : index
    %c0_13 = arith.constant 0 : index
    %17 = vector.load %arg6[%c0_12, %c0_13] : memref<192x96xf32, #tpu.memory_space<vmem>>, vector<192x96xf32>
    %cst_14 = arith.constant dense<0.000000e+00> : vector<4x96xf32>
    %18 = tpu.matmul %16, %17, %cst_14 {dimension_numbers = #tpu.dot_dimension_numbers<[1], [0], [0], [1], [0, 0, 1, 1], [], []>} : vector<4x192xf32>, vector<192x96xf32>, vector<4x96xf32> -> vector<4x96xf32>
    %c0_15 = arith.constant 0 : index
    %c0_16 = arith.constant 0 : index
    %19 = vector.load %arg7[%c0_15, %c0_16] : memref<1x96xf32, #tpu.memory_space<vmem>>, vector<1x96xf32>
    %20 = vector.broadcast %19 : vector<1x96xf32> to vector<4x96xf32>
    %21 = arith.addf %18, %20 : vector<4x96xf32>
    %22 = vector.extract_strided_slice %9 {offsets = [0, 0], sizes = [4, 4], strides = [1, 1]} : vector<4x14xf32> to vector<4x4xf32>
    %cst_17 = arith.constant dense<0xFF800000> : vector<4xf32>
    %23 = vector.multi_reduction <maximumf>, %22, %cst_17 [1] : vector<4x4xf32> to vector<4xf32>
    %24 = vector.shape_cast %23 : vector<4xf32> to vector<4x1xf32>
    %25 = vector.broadcast %24 : vector<4x1xf32> to vector<4x4xf32>
    %26 = arith.subf %22, %25 : vector<4x4xf32>
    %27 = math.exp %26 : vector<4x4xf32>
    %cst_18 = arith.constant dense<0.000000e+00> : vector<4xf32>
    %28 = vector.multi_reduction <add>, %27, %cst_18 [1] : vector<4x4xf32> to vector<4xf32>
    %29 = vector.shape_cast %28 : vector<4xf32> to vector<4x1xf32>
    %30 = tpu.reciprocal %29 {approx = true} : vector<4x1xf32> -> vector<4x1xf32>
    %31 = vector.broadcast %30 : vector<4x1xf32> to vector<4x4xf32>
    %32 = arith.mulf %27, %31 : vector<4x4xf32>
    %cst_19 = arith.constant 0.000000e+00 : f32
    %33 = vector.broadcast %cst_19 : f32 to vector<4x16xf32>
    %34 = vector.extract_strided_slice %32 {offsets = [0, 0], sizes = [4, 1], strides = [1, 1]} : vector<4x4xf32> to vector<4x1xf32>
    %35 = vector.extract_strided_slice %21 {offsets = [0, 0], sizes = [4, 16], strides = [1, 1]} : vector<4x96xf32> to vector<4x16xf32>
    %36 = vector.broadcast %34 : vector<4x1xf32> to vector<4x16xf32>
    %37 = arith.mulf %36, %35 : vector<4x16xf32>
    %38 = arith.addf %33, %37 : vector<4x16xf32>
    %39 = vector.extract_strided_slice %32 {offsets = [0, 1], sizes = [4, 1], strides = [1, 1]} : vector<4x4xf32> to vector<4x1xf32>
    %40 = vector.extract_strided_slice %21 {offsets = [0, 16], sizes = [4, 16], strides = [1, 1]} : vector<4x96xf32> to vector<4x16xf32>
    %41 = vector.broadcast %39 : vector<4x1xf32> to vector<4x16xf32>
    %42 = arith.mulf %41, %40 : vector<4x16xf32>
    %43 = arith.addf %38, %42 : vector<4x16xf32>
    %44 = vector.extract_strided_slice %32 {offsets = [0, 2], sizes = [4, 1], strides = [1, 1]} : vector<4x4xf32> to vector<4x1xf32>
    %45 = vector.extract_strided_slice %21 {offsets = [0, 64], sizes = [4, 16], strides = [1, 1]} : vector<4x96xf32> to vector<4x16xf32>
    %46 = vector.broadcast %44 : vector<4x1xf32> to vector<4x16xf32>
    %47 = arith.mulf %46, %45 : vector<4x16xf32>
    %48 = arith.addf %43, %47 : vector<4x16xf32>
    %49 = vector.extract_strided_slice %32 {offsets = [0, 3], sizes = [4, 1], strides = [1, 1]} : vector<4x4xf32> to vector<4x1xf32>
    %50 = vector.extract_strided_slice %21 {offsets = [0, 80], sizes = [4, 16], strides = [1, 1]} : vector<4x96xf32> to vector<4x16xf32>
    %51 = vector.broadcast %49 : vector<4x1xf32> to vector<4x16xf32>
    %52 = arith.mulf %51, %50 : vector<4x16xf32>
    %53 = arith.addf %48, %52 : vector<4x16xf32>
    %54 = vector.extract_strided_slice %9 {offsets = [0, 4], sizes = [4, 4], strides = [1, 1]} : vector<4x14xf32> to vector<4x4xf32>
    %cst_20 = arith.constant dense<0xFF800000> : vector<4xf32>
    %55 = vector.multi_reduction <maximumf>, %54, %cst_20 [1] : vector<4x4xf32> to vector<4xf32>
    %56 = vector.shape_cast %55 : vector<4xf32> to vector<4x1xf32>
    %57 = vector.broadcast %56 : vector<4x1xf32> to vector<4x4xf32>
    %58 = arith.subf %54, %57 : vector<4x4xf32>
    %59 = math.exp %58 : vector<4x4xf32>
    %cst_21 = arith.constant dense<0.000000e+00> : vector<4xf32>
    %60 = vector.multi_reduction <add>, %59, %cst_21 [1] : vector<4x4xf32> to vector<4xf32>
    %61 = vector.shape_cast %60 : vector<4xf32> to vector<4x1xf32>
    %62 = tpu.reciprocal %61 {approx = true} : vector<4x1xf32> -> vector<4x1xf32>
    %63 = vector.broadcast %62 : vector<4x1xf32> to vector<4x4xf32>
    %64 = arith.mulf %59, %63 : vector<4x4xf32>
    %cst_22 = arith.constant 0.000000e+00 : f32
    %65 = vector.broadcast %cst_22 : f32 to vector<4x16xf32>
    %66 = vector.extract_strided_slice %64 {offsets = [0, 0], sizes = [4, 1], strides = [1, 1]} : vector<4x4xf32> to vector<4x1xf32>
    %67 = vector.extract_strided_slice %21 {offsets = [0, 32], sizes = [4, 16], strides = [1, 1]} : vector<4x96xf32> to vector<4x16xf32>
    %68 = vector.broadcast %66 : vector<4x1xf32> to vector<4x16xf32>
    %69 = arith.mulf %68, %67 : vector<4x16xf32>
    %70 = arith.addf %65, %69 : vector<4x16xf32>
    %71 = vector.extract_strided_slice %64 {offsets = [0, 1], sizes = [4, 1], strides = [1, 1]} : vector<4x4xf32> to vector<4x1xf32>
    %72 = vector.extract_strided_slice %21 {offsets = [0, 48], sizes = [4, 16], strides = [1, 1]} : vector<4x96xf32> to vector<4x16xf32>
    %73 = vector.broadcast %71 : vector<4x1xf32> to vector<4x16xf32>
    %74 = arith.mulf %73, %72 : vector<4x16xf32>
    %75 = arith.addf %70, %74 : vector<4x16xf32>
    %76 = vector.extract_strided_slice %64 {offsets = [0, 2], sizes = [4, 1], strides = [1, 1]} : vector<4x4xf32> to vector<4x1xf32>
    %77 = vector.extract_strided_slice %21 {offsets = [0, 64], sizes = [4, 16], strides = [1, 1]} : vector<4x96xf32> to vector<4x16xf32>
    %78 = vector.broadcast %76 : vector<4x1xf32> to vector<4x16xf32>
    %79 = arith.mulf %78, %77 : vector<4x16xf32>
    %80 = arith.addf %75, %79 : vector<4x16xf32>
    %81 = vector.extract_strided_slice %64 {offsets = [0, 3], sizes = [4, 1], strides = [1, 1]} : vector<4x4xf32> to vector<4x1xf32>
    %82 = vector.extract_strided_slice %21 {offsets = [0, 80], sizes = [4, 16], strides = [1, 1]} : vector<4x96xf32> to vector<4x16xf32>
    %83 = vector.broadcast %81 : vector<4x1xf32> to vector<4x16xf32>
    %84 = arith.mulf %83, %82 : vector<4x16xf32>
    %85 = arith.addf %80, %84 : vector<4x16xf32>
    %86 = vector.extract_strided_slice %9 {offsets = [0, 8], sizes = [4, 6], strides = [1, 1]} : vector<4x14xf32> to vector<4x6xf32>
    %cst_23 = arith.constant dense<0xFF800000> : vector<4xf32>
    %87 = vector.multi_reduction <maximumf>, %86, %cst_23 [1] : vector<4x6xf32> to vector<4xf32>
    %88 = vector.shape_cast %87 : vector<4xf32> to vector<4x1xf32>
    %89 = vector.broadcast %88 : vector<4x1xf32> to vector<4x6xf32>
    %90 = arith.subf %86, %89 : vector<4x6xf32>
    %91 = math.exp %90 : vector<4x6xf32>
    %cst_24 = arith.constant dense<0.000000e+00> : vector<4xf32>
    %92 = vector.multi_reduction <add>, %91, %cst_24 [1] : vector<4x6xf32> to vector<4xf32>
    %93 = vector.shape_cast %92 : vector<4xf32> to vector<4x1xf32>
    %94 = tpu.reciprocal %93 {approx = true} : vector<4x1xf32> -> vector<4x1xf32>
    %95 = vector.broadcast %94 : vector<4x1xf32> to vector<4x6xf32>
    %96 = arith.mulf %91, %95 : vector<4x6xf32>
    %cst_25 = arith.constant 0.000000e+00 : f32
    %97 = vector.broadcast %cst_25 : f32 to vector<4x16xf32>
    %98 = vector.extract_strided_slice %96 {offsets = [0, 0], sizes = [4, 1], strides = [1, 1]} : vector<4x6xf32> to vector<4x1xf32>
    %99 = vector.extract_strided_slice %21 {offsets = [0, 0], sizes = [4, 16], strides = [1, 1]} : vector<4x96xf32> to vector<4x16xf32>
    %100 = vector.broadcast %98 : vector<4x1xf32> to vector<4x16xf32>
    %101 = arith.mulf %100, %99 : vector<4x16xf32>
    %102 = arith.addf %97, %101 : vector<4x16xf32>
    %103 = vector.extract_strided_slice %96 {offsets = [0, 1], sizes = [4, 1], strides = [1, 1]} : vector<4x6xf32> to vector<4x1xf32>
    %104 = vector.extract_strided_slice %21 {offsets = [0, 16], sizes = [4, 16], strides = [1, 1]} : vector<4x96xf32> to vector<4x16xf32>
    %105 = vector.broadcast %103 : vector<4x1xf32> to vector<4x16xf32>
    %106 = arith.mulf %105, %104 : vector<4x16xf32>
    %107 = arith.addf %102, %106 : vector<4x16xf32>
    %108 = vector.extract_strided_slice %96 {offsets = [0, 2], sizes = [4, 1], strides = [1, 1]} : vector<4x6xf32> to vector<4x1xf32>
    %109 = vector.extract_strided_slice %21 {offsets = [0, 32], sizes = [4, 16], strides = [1, 1]} : vector<4x96xf32> to vector<4x16xf32>
    %110 = vector.broadcast %108 : vector<4x1xf32> to vector<4x16xf32>
    %111 = arith.mulf %110, %109 : vector<4x16xf32>
    %112 = arith.addf %107, %111 : vector<4x16xf32>
    %113 = vector.extract_strided_slice %96 {offsets = [0, 3], sizes = [4, 1], strides = [1, 1]} : vector<4x6xf32> to vector<4x1xf32>
    %114 = vector.extract_strided_slice %21 {offsets = [0, 48], sizes = [4, 16], strides = [1, 1]} : vector<4x96xf32> to vector<4x16xf32>
    %115 = vector.broadcast %113 : vector<4x1xf32> to vector<4x16xf32>
    %116 = arith.mulf %115, %114 : vector<4x16xf32>
    %117 = arith.addf %112, %116 : vector<4x16xf32>
    %118 = vector.extract_strided_slice %96 {offsets = [0, 4], sizes = [4, 1], strides = [1, 1]} : vector<4x6xf32> to vector<4x1xf32>
    %119 = vector.extract_strided_slice %21 {offsets = [0, 64], sizes = [4, 16], strides = [1, 1]} : vector<4x96xf32> to vector<4x16xf32>
    %120 = vector.broadcast %118 : vector<4x1xf32> to vector<4x16xf32>
    %121 = arith.mulf %120, %119 : vector<4x16xf32>
    %122 = arith.addf %117, %121 : vector<4x16xf32>
    %123 = vector.extract_strided_slice %96 {offsets = [0, 5], sizes = [4, 1], strides = [1, 1]} : vector<4x6xf32> to vector<4x1xf32>
    %124 = vector.extract_strided_slice %21 {offsets = [0, 80], sizes = [4, 16], strides = [1, 1]} : vector<4x96xf32> to vector<4x16xf32>
    %125 = vector.broadcast %123 : vector<4x1xf32> to vector<4x16xf32>
    %126 = arith.mulf %125, %124 : vector<4x16xf32>
    %127 = arith.addf %122, %126 : vector<4x16xf32>
    %128 = tpu.concatenate %53, %85, %127 in 1 : vector<4x16xf32>, vector<4x16xf32>, vector<4x16xf32> -> vector<4x48xf32>
    %c0_26 = arith.constant 0 : index
    %c0_27 = arith.constant 0 : index
    %129 = vector.load %arg8[%c0_26, %c0_27] : memref<4x48xf32, #tpu.memory_space<vmem>>, vector<4x48xf32>
    tpu.vector_store %arg8[%c0_26, %c0_27], %128 {strides = array<i32>} : memref<4x48xf32, #tpu.memory_space<vmem>>, vector<4x48xf32>,
    return
  }
  func.func @transform_0(%arg0: i32) -> (i32, i32) {
    %c0_i32 = arith.constant 0 : i32
    %c0_i32_0 = arith.constant 0 : i32
    return %arg0, %c0_i32 : i32, i32
  }
  func.func @transform_1(%arg0: i32) -> (i32, i32) {
    %c0_i32 = arith.constant 0 : i32
    %c0_i32_0 = arith.constant 0 : i32
    %c0_i32_1 = arith.constant 0 : i32
    return %c0_i32, %c0_i32_0 : i32, i32
  }
  func.func @transform_2(%arg0: i32) -> (i32, i32) {
    %c0_i32 = arith.constant 0 : i32
    %c0_i32_0 = arith.constant 0 : i32
    %c0_i32_1 = arith.constant 0 : i32
    return %c0_i32, %c0_i32_0 : i32, i32
  }
  func.func @transform_3(%arg0: i32) -> (i32, i32) {
    %c0_i32 = arith.constant 0 : i32
    %c0_i32_0 = arith.constant 0 : i32
    %c0_i32_1 = arith.constant 0 : i32
    return %c0_i32, %c0_i32_0 : i32, i32
  }
  func.func @transform_4(%arg0: i32) -> (i32, i32) {
    %c0_i32 = arith.constant 0 : i32
    %c0_i32_0 = arith.constant 0 : i32
    %c0_i32_1 = arith.constant 0 : i32
    return %c0_i32, %c0_i32_0 : i32, i32
  }
  func.func @transform_5(%arg0: i32) -> (i32, i32) {
    %c0_i32 = arith.constant 0 : i32
    %c0_i32_0 = arith.constant 0 : i32
    %c0_i32_1 = arith.constant 0 : i32
    return %c0_i32, %c0_i32_0 : i32, i32
  }
  func.func @transform_6(%arg0: i32) -> (i32, i32) {
    %c0_i32 = arith.constant 0 : i32
    %c0_i32_0 = arith.constant 0 : i32
    %c0_i32_1 = arith.constant 0 : i32
    return %c0_i32, %c0_i32_0 : i32, i32
  }
  func.func @transform_7(%arg0: i32) -> (i32, i32) {
    %c0_i32 = arith.constant 0 : i32
    %c0_i32_0 = arith.constant 0 : i32
    return %arg0, %c0_i32 : i32, i32
  }
}

module attributes {stable_mosaic.version = 11 : i64} {
  func.func @_extract_kernel(%arg0: i32, %arg1: memref<4x48xf32, #tpu.memory_space<vmem>>, %arg2: memref<48x200xf32, #tpu.memory_space<vmem>>, %arg3: memref<1x200xf32, #tpu.memory_space<vmem>>, %arg4: memref<192x192xf32, #tpu.memory_space<vmem>>, %arg5: memref<1x192xf32, #tpu.memory_space<vmem>>, %arg6: memref<192x96xf32, #tpu.memory_space<vmem>>, %arg7: memref<1x96xf32, #tpu.memory_space<vmem>>, %arg8: memref<4x32xf32, #tpu.memory_space<vmem>>) attributes {dimension_semantics = [#tpu.dimension_semantics<parallel>], iteration_bounds = array<i64: 1>, scalar_prefetch = 0 : i64, scratch_operands = 0 : i64, tpu.core_type = #tpu.core_type<tc>, window_params = [{transform_indices = @transform_0, window_bounds = array<i64: 4, 48>}, {pipeline_mode = #tpu.pipeline_mode<synchronous>, transform_indices = @transform_1, window_bounds = array<i64: 48, 200>}, {pipeline_mode = #tpu.pipeline_mode<synchronous>, transform_indices = @transform_2, window_bounds = array<i64: 1, 200>}, {pipeline_mode = #tpu.pipeline_mode<synchronous>, transform_indices = @transform_3, window_bounds = array<i64: 192, 192>}, {pipeline_mode = #tpu.pipeline_mode<synchronous>, transform_indices = @transform_4, window_bounds = array<i64: 1, 192>}, {pipeline_mode = #tpu.pipeline_mode<synchronous>, transform_indices = @transform_5, window_bounds = array<i64: 192, 96>}, {pipeline_mode = #tpu.pipeline_mode<synchronous>, transform_indices = @transform_6, window_bounds = array<i64: 1, 96>}, {transform_indices = @transform_7, window_bounds = array<i64: 4, 32>}]} {
    %c0 = arith.constant 0 : index
    %c0_0 = arith.constant 0 : index
    %0 = vector.load %arg1[%c0, %c0_0] : memref<4x48xf32, #tpu.memory_space<vmem>>, vector<4x48xf32>
    %c0_1 = arith.constant 0 : index
    %c0_2 = arith.constant 0 : index
    %1 = vector.load %arg2[%c0_1, %c0_2] : memref<48x200xf32, #tpu.memory_space<vmem>>, vector<48x200xf32>
    %cst = arith.constant dense<0.000000e+00> : vector<4x200xf32>
    %2 = tpu.matmul %0, %1, %cst {dimension_numbers = #tpu.dot_dimension_numbers<[1], [0], [0], [1], [0, 0, 1, 1], [], []>} : vector<4x48xf32>, vector<48x200xf32>, vector<4x200xf32> -> vector<4x200xf32>
    %c0_3 = arith.constant 0 : index
    %c0_4 = arith.constant 0 : index
    %3 = vector.load %arg3[%c0_3, %c0_4] : memref<1x200xf32, #tpu.memory_space<vmem>>, vector<1x200xf32>
    %4 = vector.broadcast %3 : vector<1x200xf32> to vector<4x200xf32>
    %5 = arith.addf %2, %4 : vector<4x200xf32>
    %6 = vector.extract_strided_slice %5 {offsets = [0, 0], sizes = [4, 192], strides = [1, 1]} : vector<4x200xf32> to vector<4x192xf32>
    %cst_5 = arith.constant 0.000000e+00 : f32
    %7 = vector.broadcast %cst_5 : f32 to vector<4x192xf32>
    %8 = arith.maximumf %6, %7 : vector<4x192xf32>
    %9 = vector.extract_strided_slice %5 {offsets = [0, 192], sizes = [4, 8], strides = [1, 1]} : vector<4x200xf32> to vector<4x8xf32>
    %c0_6 = arith.constant 0 : index
    %c0_7 = arith.constant 0 : index
    %10 = vector.load %arg4[%c0_6, %c0_7] : memref<192x192xf32, #tpu.memory_space<vmem>>, vector<192x192xf32>
    %cst_8 = arith.constant dense<0.000000e+00> : vector<4x192xf32>
    %11 = tpu.matmul %8, %10, %cst_8 {dimension_numbers = #tpu.dot_dimension_numbers<[1], [0], [0], [1], [0, 0, 1, 1], [], []>} : vector<4x192xf32>, vector<192x192xf32>, vector<4x192xf32> -> vector<4x192xf32>
    %c0_9 = arith.constant 0 : index
    %c0_10 = arith.constant 0 : index
    %12 = vector.load %arg5[%c0_9, %c0_10] : memref<1x192xf32, #tpu.memory_space<vmem>>, vector<1x192xf32>
    %13 = vector.broadcast %12 : vector<1x192xf32> to vector<4x192xf32>
    %14 = arith.addf %11, %13 : vector<4x192xf32>
    %cst_11 = arith.constant 0.000000e+00 : f32
    %15 = vector.broadcast %cst_11 : f32 to vector<4x192xf32>
    %16 = arith.maximumf %14, %15 : vector<4x192xf32>
    %c0_12 = arith.constant 0 : index
    %c0_13 = arith.constant 0 : index
    %17 = vector.load %arg6[%c0_12, %c0_13] : memref<192x96xf32, #tpu.memory_space<vmem>>, vector<192x96xf32>
    %cst_14 = arith.constant dense<0.000000e+00> : vector<4x96xf32>
    %18 = tpu.matmul %16, %17, %cst_14 {dimension_numbers = #tpu.dot_dimension_numbers<[1], [0], [0], [1], [0, 0, 1, 1], [], []>} : vector<4x192xf32>, vector<192x96xf32>, vector<4x96xf32> -> vector<4x96xf32>
    %c0_15 = arith.constant 0 : index
    %c0_16 = arith.constant 0 : index
    %19 = vector.load %arg7[%c0_15, %c0_16] : memref<1x96xf32, #tpu.memory_space<vmem>>, vector<1x96xf32>
    %20 = vector.broadcast %19 : vector<1x96xf32> to vector<4x96xf32>
    %21 = arith.addf %18, %20 : vector<4x96xf32>
    %22 = vector.extract_strided_slice %9 {offsets = [0, 0], sizes = [4, 4], strides = [1, 1]} : vector<4x8xf32> to vector<4x4xf32>
    %cst_17 = arith.constant dense<0xFF800000> : vector<4xf32>
    %23 = vector.multi_reduction <maximumf>, %22, %cst_17 [1] : vector<4x4xf32> to vector<4xf32>
    %24 = vector.shape_cast %23 : vector<4xf32> to vector<4x1xf32>
    %25 = vector.broadcast %24 : vector<4x1xf32> to vector<4x4xf32>
    %26 = arith.subf %22, %25 : vector<4x4xf32>
    %27 = math.exp %26 : vector<4x4xf32>
    %cst_18 = arith.constant dense<0.000000e+00> : vector<4xf32>
    %28 = vector.multi_reduction <add>, %27, %cst_18 [1] : vector<4x4xf32> to vector<4xf32>
    %29 = vector.shape_cast %28 : vector<4xf32> to vector<4x1xf32>
    %30 = tpu.reciprocal %29 {approx = true} : vector<4x1xf32> -> vector<4x1xf32>
    %31 = vector.broadcast %30 : vector<4x1xf32> to vector<4x4xf32>
    %32 = arith.mulf %27, %31 : vector<4x4xf32>
    %cst_19 = arith.constant 0.000000e+00 : f32
    %33 = vector.broadcast %cst_19 : f32 to vector<4x16xf32>
    %34 = vector.extract_strided_slice %32 {offsets = [0, 0], sizes = [4, 1], strides = [1, 1]} : vector<4x4xf32> to vector<4x1xf32>
    %35 = vector.extract_strided_slice %21 {offsets = [0, 0], sizes = [4, 16], strides = [1, 1]} : vector<4x96xf32> to vector<4x16xf32>
    %36 = vector.broadcast %34 : vector<4x1xf32> to vector<4x16xf32>
    %37 = arith.mulf %36, %35 : vector<4x16xf32>
    %38 = arith.addf %33, %37 : vector<4x16xf32>
    %39 = vector.extract_strided_slice %32 {offsets = [0, 1], sizes = [4, 1], strides = [1, 1]} : vector<4x4xf32> to vector<4x1xf32>
    %40 = vector.extract_strided_slice %21 {offsets = [0, 16], sizes = [4, 16], strides = [1, 1]} : vector<4x96xf32> to vector<4x16xf32>
    %41 = vector.broadcast %39 : vector<4x1xf32> to vector<4x16xf32>
    %42 = arith.mulf %41, %40 : vector<4x16xf32>
    %43 = arith.addf %38, %42 : vector<4x16xf32>
    %44 = vector.extract_strided_slice %32 {offsets = [0, 2], sizes = [4, 1], strides = [1, 1]} : vector<4x4xf32> to vector<4x1xf32>
    %45 = vector.extract_strided_slice %21 {offsets = [0, 64], sizes = [4, 16], strides = [1, 1]} : vector<4x96xf32> to vector<4x16xf32>
    %46 = vector.broadcast %44 : vector<4x1xf32> to vector<4x16xf32>
    %47 = arith.mulf %46, %45 : vector<4x16xf32>
    %48 = arith.addf %43, %47 : vector<4x16xf32>
    %49 = vector.extract_strided_slice %32 {offsets = [0, 3], sizes = [4, 1], strides = [1, 1]} : vector<4x4xf32> to vector<4x1xf32>
    %50 = vector.extract_strided_slice %21 {offsets = [0, 80], sizes = [4, 16], strides = [1, 1]} : vector<4x96xf32> to vector<4x16xf32>
    %51 = vector.broadcast %49 : vector<4x1xf32> to vector<4x16xf32>
    %52 = arith.mulf %51, %50 : vector<4x16xf32>
    %53 = arith.addf %48, %52 : vector<4x16xf32>
    %54 = vector.extract_strided_slice %9 {offsets = [0, 4], sizes = [4, 4], strides = [1, 1]} : vector<4x8xf32> to vector<4x4xf32>
    %cst_20 = arith.constant dense<0xFF800000> : vector<4xf32>
    %55 = vector.multi_reduction <maximumf>, %54, %cst_20 [1] : vector<4x4xf32> to vector<4xf32>
    %56 = vector.shape_cast %55 : vector<4xf32> to vector<4x1xf32>
    %57 = vector.broadcast %56 : vector<4x1xf32> to vector<4x4xf32>
    %58 = arith.subf %54, %57 : vector<4x4xf32>
    %59 = math.exp %58 : vector<4x4xf32>
    %cst_21 = arith.constant dense<0.000000e+00> : vector<4xf32>
    %60 = vector.multi_reduction <add>, %59, %cst_21 [1] : vector<4x4xf32> to vector<4xf32>
    %61 = vector.shape_cast %60 : vector<4xf32> to vector<4x1xf32>
    %62 = tpu.reciprocal %61 {approx = true} : vector<4x1xf32> -> vector<4x1xf32>
    %63 = vector.broadcast %62 : vector<4x1xf32> to vector<4x4xf32>
    %64 = arith.mulf %59, %63 : vector<4x4xf32>
    %cst_22 = arith.constant 0.000000e+00 : f32
    %65 = vector.broadcast %cst_22 : f32 to vector<4x16xf32>
    %66 = vector.extract_strided_slice %64 {offsets = [0, 0], sizes = [4, 1], strides = [1, 1]} : vector<4x4xf32> to vector<4x1xf32>
    %67 = vector.extract_strided_slice %21 {offsets = [0, 32], sizes = [4, 16], strides = [1, 1]} : vector<4x96xf32> to vector<4x16xf32>
    %68 = vector.broadcast %66 : vector<4x1xf32> to vector<4x16xf32>
    %69 = arith.mulf %68, %67 : vector<4x16xf32>
    %70 = arith.addf %65, %69 : vector<4x16xf32>
    %71 = vector.extract_strided_slice %64 {offsets = [0, 1], sizes = [4, 1], strides = [1, 1]} : vector<4x4xf32> to vector<4x1xf32>
    %72 = vector.extract_strided_slice %21 {offsets = [0, 48], sizes = [4, 16], strides = [1, 1]} : vector<4x96xf32> to vector<4x16xf32>
    %73 = vector.broadcast %71 : vector<4x1xf32> to vector<4x16xf32>
    %74 = arith.mulf %73, %72 : vector<4x16xf32>
    %75 = arith.addf %70, %74 : vector<4x16xf32>
    %76 = vector.extract_strided_slice %64 {offsets = [0, 2], sizes = [4, 1], strides = [1, 1]} : vector<4x4xf32> to vector<4x1xf32>
    %77 = vector.extract_strided_slice %21 {offsets = [0, 64], sizes = [4, 16], strides = [1, 1]} : vector<4x96xf32> to vector<4x16xf32>
    %78 = vector.broadcast %76 : vector<4x1xf32> to vector<4x16xf32>
    %79 = arith.mulf %78, %77 : vector<4x16xf32>
    %80 = arith.addf %75, %79 : vector<4x16xf32>
    %81 = vector.extract_strided_slice %64 {offsets = [0, 3], sizes = [4, 1], strides = [1, 1]} : vector<4x4xf32> to vector<4x1xf32>
    %82 = vector.extract_strided_slice %21 {offsets = [0, 80], sizes = [4, 16], strides = [1, 1]} : vector<4x96xf32> to vector<4x16xf32>
    %83 = vector.broadcast %81 : vector<4x1xf32> to vector<4x16xf32>
    %84 = arith.mulf %83, %82 : vector<4x16xf32>
    %85 = arith.addf %80, %84 : vector<4x16xf32>
    %86 = tpu.concatenate %53, %85 in 1 : vector<4x16xf32>, vector<4x16xf32> -> vector<4x32xf32>
    %c0_23 = arith.constant 0 : index
    %c0_24 = arith.constant 0 : index
    %87 = vector.load %arg8[%c0_23, %c0_24] : memref<4x32xf32, #tpu.memory_space<vmem>>, vector<4x32xf32>
    tpu.vector_store %arg8[%c0_23, %c0_24], %86 {strides = array<i32>} : memref<4x32xf32, #tpu.memory_space<vmem>>, vector<4x32xf32>,
    return
  }
  func.func @transform_0(%arg0: i32) -> (i32, i32) {
    %c0_i32 = arith.constant 0 : i32
    %c0_i32_0 = arith.constant 0 : i32
    return %arg0, %c0_i32 : i32, i32
  }
  func.func @transform_1(%arg0: i32) -> (i32, i32) {
    %c0_i32 = arith.constant 0 : i32
    %c0_i32_0 = arith.constant 0 : i32
    %c0_i32_1 = arith.constant 0 : i32
    return %c0_i32, %c0_i32_0 : i32, i32
  }
  func.func @transform_2(%arg0: i32) -> (i32, i32) {
    %c0_i32 = arith.constant 0 : i32
    %c0_i32_0 = arith.constant 0 : i32
    %c0_i32_1 = arith.constant 0 : i32
    return %c0_i32, %c0_i32_0 : i32, i32
  }
  func.func @transform_3(%arg0: i32) -> (i32, i32) {
    %c0_i32 = arith.constant 0 : i32
    %c0_i32_0 = arith.constant 0 : i32
    %c0_i32_1 = arith.constant 0 : i32
    return %c0_i32, %c0_i32_0 : i32, i32
  }
  func.func @transform_4(%arg0: i32) -> (i32, i32) {
    %c0_i32 = arith.constant 0 : i32
    %c0_i32_0 = arith.constant 0 : i32
    %c0_i32_1 = arith.constant 0 : i32
    return %c0_i32, %c0_i32_0 : i32, i32
  }
  func.func @transform_5(%arg0: i32) -> (i32, i32) {
    %c0_i32 = arith.constant 0 : i32
    %c0_i32_0 = arith.constant 0 : i32
    %c0_i32_1 = arith.constant 0 : i32
    return %c0_i32, %c0_i32_0 : i32, i32
  }
  func.func @transform_6(%arg0: i32) -> (i32, i32) {
    %c0_i32 = arith.constant 0 : i32
    %c0_i32_0 = arith.constant 0 : i32
    %c0_i32_1 = arith.constant 0 : i32
    return %c0_i32, %c0_i32_0 : i32, i32
  }
  func.func @transform_7(%arg0: i32) -> (i32, i32) {
    %c0_i32 = arith.constant 0 : i32
    %c0_i32_0 = arith.constant 0 : i32
    return %arg0, %c0_i32 : i32, i32
  }
}

module attributes {stable_mosaic.version = 11 : i64} {
  func.func @_towers_kernel(%arg0: i32, %arg1: memref<4x32xf32, #tpu.memory_space<vmem>>, %arg2: memref<32x64xf32, #tpu.memory_space<vmem>>, %arg3: memref<1x64xf32, #tpu.memory_space<vmem>>, %arg4: memref<64x64xf32, #tpu.memory_space<vmem>>, %arg5: memref<1x64xf32, #tpu.memory_space<vmem>>, %arg6: memref<64x2xf32, #tpu.memory_space<vmem>>, %arg7: memref<1x2xf32, #tpu.memory_space<vmem>>, %arg8: memref<4x2xf32, #tpu.memory_space<vmem>>) attributes {dimension_semantics = [#tpu.dimension_semantics<parallel>], iteration_bounds = array<i64: 1>, scalar_prefetch = 0 : i64, scratch_operands = 0 : i64, tpu.core_type = #tpu.core_type<tc>, window_params = [{transform_indices = @transform_0, window_bounds = array<i64: 4, 32>}, {pipeline_mode = #tpu.pipeline_mode<synchronous>, transform_indices = @transform_1, window_bounds = array<i64: 32, 64>}, {pipeline_mode = #tpu.pipeline_mode<synchronous>, transform_indices = @transform_2, window_bounds = array<i64: 1, 64>}, {pipeline_mode = #tpu.pipeline_mode<synchronous>, transform_indices = @transform_3, window_bounds = array<i64: 64, 64>}, {pipeline_mode = #tpu.pipeline_mode<synchronous>, transform_indices = @transform_4, window_bounds = array<i64: 1, 64>}, {pipeline_mode = #tpu.pipeline_mode<synchronous>, transform_indices = @transform_5, window_bounds = array<i64: 64, 2>}, {pipeline_mode = #tpu.pipeline_mode<synchronous>, transform_indices = @transform_6, window_bounds = array<i64: 1, 2>}, {transform_indices = @transform_7, window_bounds = array<i64: 4, 2>}]} {
    %c0 = arith.constant 0 : index
    %c0_0 = arith.constant 0 : index
    %0 = vector.load %arg1[%c0, %c0_0] : memref<4x32xf32, #tpu.memory_space<vmem>>, vector<4x32xf32>
    %c0_1 = arith.constant 0 : index
    %c0_2 = arith.constant 0 : index
    %1 = vector.load %arg2[%c0_1, %c0_2] : memref<32x64xf32, #tpu.memory_space<vmem>>, vector<32x64xf32>
    %cst = arith.constant dense<0.000000e+00> : vector<4x64xf32>
    %2 = tpu.matmul %0, %1, %cst {dimension_numbers = #tpu.dot_dimension_numbers<[1], [0], [0], [1], [0, 0, 1, 1], [], []>} : vector<4x32xf32>, vector<32x64xf32>, vector<4x64xf32> -> vector<4x64xf32>
    %c0_3 = arith.constant 0 : index
    %c0_4 = arith.constant 0 : index
    %3 = vector.load %arg3[%c0_3, %c0_4] : memref<1x64xf32, #tpu.memory_space<vmem>>, vector<1x64xf32>
    %4 = vector.broadcast %3 : vector<1x64xf32> to vector<4x64xf32>
    %5 = arith.addf %2, %4 : vector<4x64xf32>
    %cst_5 = arith.constant 0.000000e+00 : f32
    %6 = vector.broadcast %cst_5 : f32 to vector<4x64xf32>
    %7 = arith.maximumf %5, %6 : vector<4x64xf32>
    %c0_6 = arith.constant 0 : index
    %c0_7 = arith.constant 0 : index
    %8 = vector.load %arg4[%c0_6, %c0_7] : memref<64x64xf32, #tpu.memory_space<vmem>>, vector<64x64xf32>
    %cst_8 = arith.constant dense<0.000000e+00> : vector<4x64xf32>
    %9 = tpu.matmul %7, %8, %cst_8 {dimension_numbers = #tpu.dot_dimension_numbers<[1], [0], [0], [1], [0, 0, 1, 1], [], []>} : vector<4x64xf32>, vector<64x64xf32>, vector<4x64xf32> -> vector<4x64xf32>
    %c0_9 = arith.constant 0 : index
    %c0_10 = arith.constant 0 : index
    %10 = vector.load %arg5[%c0_9, %c0_10] : memref<1x64xf32, #tpu.memory_space<vmem>>, vector<1x64xf32>
    %11 = vector.broadcast %10 : vector<1x64xf32> to vector<4x64xf32>
    %12 = arith.addf %9, %11 : vector<4x64xf32>
    %cst_11 = arith.constant 0.000000e+00 : f32
    %13 = vector.broadcast %cst_11 : f32 to vector<4x64xf32>
    %14 = arith.maximumf %12, %13 : vector<4x64xf32>
    %c0_12 = arith.constant 0 : index
    %c0_13 = arith.constant 0 : index
    %15 = vector.load %arg6[%c0_12, %c0_13] : memref<64x2xf32, #tpu.memory_space<vmem>>, vector<64x2xf32>
    %cst_14 = arith.constant dense<0.000000e+00> : vector<4x2xf32>
    %16 = tpu.matmul %14, %15, %cst_14 {dimension_numbers = #tpu.dot_dimension_numbers<[1], [0], [0], [1], [0, 0, 1, 1], [], []>} : vector<4x64xf32>, vector<64x2xf32>, vector<4x2xf32> -> vector<4x2xf32>
    %c0_15 = arith.constant 0 : index
    %c0_16 = arith.constant 0 : index
    %17 = vector.load %arg7[%c0_15, %c0_16] : memref<1x2xf32, #tpu.memory_space<vmem>>, vector<1x2xf32>
    %18 = vector.broadcast %17 : vector<1x2xf32> to vector<4x2xf32>
    %19 = arith.addf %16, %18 : vector<4x2xf32>
    %20 = arith.negf %19 : vector<4x2xf32>
    %21 = math.exp %20 : vector<4x2xf32>
    %cst_17 = arith.constant 1.000000e+00 : f32
    %22 = vector.broadcast %cst_17 : f32 to vector<4x2xf32>
    %23 = arith.addf %22, %21 : vector<4x2xf32>
    %24 = arith.divf %22, %23 : vector<4x2xf32>
    %c0_18 = arith.constant 0 : index
    %c0_19 = arith.constant 0 : index
    %25 = vector.load %arg8[%c0_18, %c0_19] : memref<4x2xf32, #tpu.memory_space<vmem>>, vector<4x2xf32>
    tpu.vector_store %arg8[%c0_18, %c0_19], %24 {strides = array<i32>} : memref<4x2xf32, #tpu.memory_space<vmem>>, vector<4x2xf32>,
    return
  }
  func.func @transform_0(%arg0: i32) -> (i32, i32) {
    %c0_i32 = arith.constant 0 : i32
    %c0_i32_0 = arith.constant 0 : i32
    return %arg0, %c0_i32 : i32, i32
  }
  func.func @transform_1(%arg0: i32) -> (i32, i32) {
    %c0_i32 = arith.constant 0 : i32
    %c0_i32_0 = arith.constant 0 : i32
    %c0_i32_1 = arith.constant 0 : i32
    return %c0_i32, %c0_i32_0 : i32, i32
  }
  func.func @transform_2(%arg0: i32) -> (i32, i32) {
    %c0_i32 = arith.constant 0 : i32
    %c0_i32_0 = arith.constant 0 : i32
    %c0_i32_1 = arith.constant 0 : i32
    return %c0_i32, %c0_i32_0 : i32, i32
  }
  func.func @transform_3(%arg0: i32) -> (i32, i32) {
    %c0_i32 = arith.constant 0 : i32
    %c0_i32_0 = arith.constant 0 : i32
    %c0_i32_1 = arith.constant 0 : i32
    return %c0_i32, %c0_i32_0 : i32, i32
  }
  func.func @transform_4(%arg0: i32) -> (i32, i32) {
    %c0_i32 = arith.constant 0 : i32
    %c0_i32_0 = arith.constant 0 : i32
    %c0_i32_1 = arith.constant 0 : i32
    return %c0_i32, %c0_i32_0 : i32, i32
  }
  func.func @transform_5(%arg0: i32) -> (i32, i32) {
    %c0_i32 = arith.constant 0 : i32
    %c0_i32_0 = arith.constant 0 : i32
    %c0_i32_1 = arith.constant 0 : i32
    return %c0_i32, %c0_i32_0 : i32, i32
  }
  func.func @transform_6(%arg0: i32) -> (i32, i32) {
    %c0_i32 = arith.constant 0 : i32
    %c0_i32_0 = arith.constant 0 : i32
    %c0_i32_1 = arith.constant 0 : i32
    return %c0_i32, %c0_i32_0 : i32, i32
  }
  func.func @transform_7(%arg0: i32) -> (i32, i32) {
    %c0_i32 = arith.constant 0 : i32
    %c0_i32_0 = arith.constant 0 : i32
    return %arg0, %c0_i32 : i32, i32
  }
}

module attributes {stable_mosaic.version = 11 : i64} {
  func.func @_extract_kernel(%arg0: i32, %arg1: memref<4x20xf32, #tpu.memory_space<vmem>>, %arg2: memref<20x206xf32, #tpu.memory_space<vmem>>, %arg3: memref<1x206xf32, #tpu.memory_space<vmem>>, %arg4: memref<192x192xf32, #tpu.memory_space<vmem>>, %arg5: memref<1x192xf32, #tpu.memory_space<vmem>>, %arg6: memref<192x96xf32, #tpu.memory_space<vmem>>, %arg7: memref<1x96xf32, #tpu.memory_space<vmem>>, %arg8: memref<4x48xf32, #tpu.memory_space<vmem>>) attributes {dimension_semantics = [#tpu.dimension_semantics<parallel>], iteration_bounds = array<i64: 1>, scalar_prefetch = 0 : i64, scratch_operands = 0 : i64, tpu.core_type = #tpu.core_type<tc>, window_params = [{transform_indices = @transform_0, window_bounds = array<i64: 4, 20>}, {pipeline_mode = #tpu.pipeline_mode<synchronous>, transform_indices = @transform_1, window_bounds = array<i64: 20, 206>}, {pipeline_mode = #tpu.pipeline_mode<synchronous>, transform_indices = @transform_2, window_bounds = array<i64: 1, 206>}, {pipeline_mode = #tpu.pipeline_mode<synchronous>, transform_indices = @transform_3, window_bounds = array<i64: 192, 192>}, {pipeline_mode = #tpu.pipeline_mode<synchronous>, transform_indices = @transform_4, window_bounds = array<i64: 1, 192>}, {pipeline_mode = #tpu.pipeline_mode<synchronous>, transform_indices = @transform_5, window_bounds = array<i64: 192, 96>}, {pipeline_mode = #tpu.pipeline_mode<synchronous>, transform_indices = @transform_6, window_bounds = array<i64: 1, 96>}, {transform_indices = @transform_7, window_bounds = array<i64: 4, 48>}]} {
    %c0 = arith.constant 0 : index
    %c0_0 = arith.constant 0 : index
    %0 = vector.load %arg1[%c0, %c0_0] : memref<4x20xf32, #tpu.memory_space<vmem>>, vector<4x20xf32>
    %c0_1 = arith.constant 0 : index
    %c0_2 = arith.constant 0 : index
    %1 = vector.load %arg2[%c0_1, %c0_2] : memref<20x206xf32, #tpu.memory_space<vmem>>, vector<20x206xf32>
    %cst = arith.constant dense<0.000000e+00> : vector<4x206xf32>
    %2 = tpu.matmul %0, %1, %cst {dimension_numbers = #tpu.dot_dimension_numbers<[1], [0], [0], [1], [0, 0, 1, 1], [], []>} : vector<4x20xf32>, vector<20x206xf32>, vector<4x206xf32> -> vector<4x206xf32>
    %c0_3 = arith.constant 0 : index
    %c0_4 = arith.constant 0 : index
    %3 = vector.load %arg3[%c0_3, %c0_4] : memref<1x206xf32, #tpu.memory_space<vmem>>, vector<1x206xf32>
    %4 = vector.broadcast %3 : vector<1x206xf32> to vector<4x206xf32>
    %5 = arith.addf %2, %4 : vector<4x206xf32>
    %6 = vector.extract_strided_slice %5 {offsets = [0, 0], sizes = [4, 192], strides = [1, 1]} : vector<4x206xf32> to vector<4x192xf32>
    %cst_5 = arith.constant 0.000000e+00 : f32
    %7 = vector.broadcast %cst_5 : f32 to vector<4x192xf32>
    %8 = arith.maximumf %6, %7 : vector<4x192xf32>
    %9 = vector.extract_strided_slice %5 {offsets = [0, 192], sizes = [4, 14], strides = [1, 1]} : vector<4x206xf32> to vector<4x14xf32>
    %c0_6 = arith.constant 0 : index
    %c0_7 = arith.constant 0 : index
    %10 = vector.load %arg4[%c0_6, %c0_7] : memref<192x192xf32, #tpu.memory_space<vmem>>, vector<192x192xf32>
    %cst_8 = arith.constant dense<0.000000e+00> : vector<4x192xf32>
    %11 = tpu.matmul %8, %10, %cst_8 {dimension_numbers = #tpu.dot_dimension_numbers<[1], [0], [0], [1], [0, 0, 1, 1], [], []>} : vector<4x192xf32>, vector<192x192xf32>, vector<4x192xf32> -> vector<4x192xf32>
    %c0_9 = arith.constant 0 : index
    %c0_10 = arith.constant 0 : index
    %12 = vector.load %arg5[%c0_9, %c0_10] : memref<1x192xf32, #tpu.memory_space<vmem>>, vector<1x192xf32>
    %13 = vector.broadcast %12 : vector<1x192xf32> to vector<4x192xf32>
    %14 = arith.addf %11, %13 : vector<4x192xf32>
    %cst_11 = arith.constant 0.000000e+00 : f32
    %15 = vector.broadcast %cst_11 : f32 to vector<4x192xf32>
    %16 = arith.maximumf %14, %15 : vector<4x192xf32>
    %c0_12 = arith.constant 0 : index
    %c0_13 = arith.constant 0 : index
    %17 = vector.load %arg6[%c0_12, %c0_13] : memref<192x96xf32, #tpu.memory_space<vmem>>, vector<192x96xf32>
    %cst_14 = arith.constant dense<0.000000e+00> : vector<4x96xf32>
    %18 = tpu.matmul %16, %17, %cst_14 {dimension_numbers = #tpu.dot_dimension_numbers<[1], [0], [0], [1], [0, 0, 1, 1], [], []>} : vector<4x192xf32>, vector<192x96xf32>, vector<4x96xf32> -> vector<4x96xf32>
    %c0_15 = arith.constant 0 : index
    %c0_16 = arith.constant 0 : index
    %19 = vector.load %arg7[%c0_15, %c0_16] : memref<1x96xf32, #tpu.memory_space<vmem>>, vector<1x96xf32>
    %20 = vector.broadcast %19 : vector<1x96xf32> to vector<4x96xf32>
    %21 = arith.addf %18, %20 : vector<4x96xf32>
    %22 = vector.extract_strided_slice %9 {offsets = [0, 0], sizes = [4, 4], strides = [1, 1]} : vector<4x14xf32> to vector<4x4xf32>
    %cst_17 = arith.constant dense<0xFF800000> : vector<4xf32>
    %23 = vector.multi_reduction <maximumf>, %22, %cst_17 [1] : vector<4x4xf32> to vector<4xf32>
    %24 = vector.shape_cast %23 : vector<4xf32> to vector<4x1xf32>
    %25 = vector.broadcast %24 : vector<4x1xf32> to vector<4x4xf32>
    %26 = arith.subf %22, %25 : vector<4x4xf32>
    %27 = math.exp %26 : vector<4x4xf32>
    %cst_18 = arith.constant dense<0.000000e+00> : vector<4xf32>
    %28 = vector.multi_reduction <add>, %27, %cst_18 [1] : vector<4x4xf32> to vector<4xf32>
    %29 = vector.shape_cast %28 : vector<4xf32> to vector<4x1xf32>
    %30 = tpu.reciprocal %29 {approx = true} : vector<4x1xf32> -> vector<4x1xf32>
    %31 = vector.broadcast %30 : vector<4x1xf32> to vector<4x4xf32>
    %32 = arith.mulf %27, %31 : vector<4x4xf32>
    %cst_19 = arith.constant 0.000000e+00 : f32
    %33 = vector.broadcast %cst_19 : f32 to vector<4x16xf32>
    %34 = vector.extract_strided_slice %32 {offsets = [0, 0], sizes = [4, 1], strides = [1, 1]} : vector<4x4xf32> to vector<4x1xf32>
    %35 = vector.extract_strided_slice %21 {offsets = [0, 0], sizes = [4, 16], strides = [1, 1]} : vector<4x96xf32> to vector<4x16xf32>
    %36 = vector.broadcast %34 : vector<4x1xf32> to vector<4x16xf32>
    %37 = arith.mulf %36, %35 : vector<4x16xf32>
    %38 = arith.addf %33, %37 : vector<4x16xf32>
    %39 = vector.extract_strided_slice %32 {offsets = [0, 1], sizes = [4, 1], strides = [1, 1]} : vector<4x4xf32> to vector<4x1xf32>
    %40 = vector.extract_strided_slice %21 {offsets = [0, 16], sizes = [4, 16], strides = [1, 1]} : vector<4x96xf32> to vector<4x16xf32>
    %41 = vector.broadcast %39 : vector<4x1xf32> to vector<4x16xf32>
    %42 = arith.mulf %41, %40 : vector<4x16xf32>
    %43 = arith.addf %38, %42 : vector<4x16xf32>
    %44 = vector.extract_strided_slice %32 {offsets = [0, 2], sizes = [4, 1], strides = [1, 1]} : vector<4x4xf32> to vector<4x1xf32>
    %45 = vector.extract_strided_slice %21 {offsets = [0, 64], sizes = [4, 16], strides = [1, 1]} : vector<4x96xf32> to vector<4x16xf32>
    %46 = vector.broadcast %44 : vector<4x1xf32> to vector<4x16xf32>
    %47 = arith.mulf %46, %45 : vector<4x16xf32>
    %48 = arith.addf %43, %47 : vector<4x16xf32>
    %49 = vector.extract_strided_slice %32 {offsets = [0, 3], sizes = [4, 1], strides = [1, 1]} : vector<4x4xf32> to vector<4x1xf32>
    %50 = vector.extract_strided_slice %21 {offsets = [0, 80], sizes = [4, 16], strides = [1, 1]} : vector<4x96xf32> to vector<4x16xf32>
    %51 = vector.broadcast %49 : vector<4x1xf32> to vector<4x16xf32>
    %52 = arith.mulf %51, %50 : vector<4x16xf32>
    %53 = arith.addf %48, %52 : vector<4x16xf32>
    %54 = vector.extract_strided_slice %9 {offsets = [0, 4], sizes = [4, 4], strides = [1, 1]} : vector<4x14xf32> to vector<4x4xf32>
    %cst_20 = arith.constant dense<0xFF800000> : vector<4xf32>
    %55 = vector.multi_reduction <maximumf>, %54, %cst_20 [1] : vector<4x4xf32> to vector<4xf32>
    %56 = vector.shape_cast %55 : vector<4xf32> to vector<4x1xf32>
    %57 = vector.broadcast %56 : vector<4x1xf32> to vector<4x4xf32>
    %58 = arith.subf %54, %57 : vector<4x4xf32>
    %59 = math.exp %58 : vector<4x4xf32>
    %cst_21 = arith.constant dense<0.000000e+00> : vector<4xf32>
    %60 = vector.multi_reduction <add>, %59, %cst_21 [1] : vector<4x4xf32> to vector<4xf32>
    %61 = vector.shape_cast %60 : vector<4xf32> to vector<4x1xf32>
    %62 = tpu.reciprocal %61 {approx = true} : vector<4x1xf32> -> vector<4x1xf32>
    %63 = vector.broadcast %62 : vector<4x1xf32> to vector<4x4xf32>
    %64 = arith.mulf %59, %63 : vector<4x4xf32>
    %cst_22 = arith.constant 0.000000e+00 : f32
    %65 = vector.broadcast %cst_22 : f32 to vector<4x16xf32>
    %66 = vector.extract_strided_slice %64 {offsets = [0, 0], sizes = [4, 1], strides = [1, 1]} : vector<4x4xf32> to vector<4x1xf32>
    %67 = vector.extract_strided_slice %21 {offsets = [0, 32], sizes = [4, 16], strides = [1, 1]} : vector<4x96xf32> to vector<4x16xf32>
    %68 = vector.broadcast %66 : vector<4x1xf32> to vector<4x16xf32>
    %69 = arith.mulf %68, %67 : vector<4x16xf32>
    %70 = arith.addf %65, %69 : vector<4x16xf32>
    %71 = vector.extract_strided_slice %64 {offsets = [0, 1], sizes = [4, 1], strides = [1, 1]} : vector<4x4xf32> to vector<4x1xf32>
    %72 = vector.extract_strided_slice %21 {offsets = [0, 48], sizes = [4, 16], strides = [1, 1]} : vector<4x96xf32> to vector<4x16xf32>
    %73 = vector.broadcast %71 : vector<4x1xf32> to vector<4x16xf32>
    %74 = arith.mulf %73, %72 : vector<4x16xf32>
    %75 = arith.addf %70, %74 : vector<4x16xf32>
    %76 = vector.extract_strided_slice %64 {offsets = [0, 2], sizes = [4, 1], strides = [1, 1]} : vector<4x4xf32> to vector<4x1xf32>
    %77 = vector.extract_strided_slice %21 {offsets = [0, 64], sizes = [4, 16], strides = [1, 1]} : vector<4x96xf32> to vector<4x16xf32>
    %78 = vector.broadcast %76 : vector<4x1xf32> to vector<4x16xf32>
    %79 = arith.mulf %78, %77 : vector<4x16xf32>
    %80 = arith.addf %75, %79 : vector<4x16xf32>
    %81 = vector.extract_strided_slice %64 {offsets = [0, 3], sizes = [4, 1], strides = [1, 1]} : vector<4x4xf32> to vector<4x1xf32>
    %82 = vector.extract_strided_slice %21 {offsets = [0, 80], sizes = [4, 16], strides = [1, 1]} : vector<4x96xf32> to vector<4x16xf32>
    %83 = vector.broadcast %81 : vector<4x1xf32> to vector<4x16xf32>
    %84 = arith.mulf %83, %82 : vector<4x16xf32>
    %85 = arith.addf %80, %84 : vector<4x16xf32>
    %86 = vector.extract_strided_slice %9 {offsets = [0, 8], sizes = [4, 6], strides = [1, 1]} : vector<4x14xf32> to vector<4x6xf32>
    %cst_23 = arith.constant dense<0xFF800000> : vector<4xf32>
    %87 = vector.multi_reduction <maximumf>, %86, %cst_23 [1] : vector<4x6xf32> to vector<4xf32>
    %88 = vector.shape_cast %87 : vector<4xf32> to vector<4x1xf32>
    %89 = vector.broadcast %88 : vector<4x1xf32> to vector<4x6xf32>
    %90 = arith.subf %86, %89 : vector<4x6xf32>
    %91 = math.exp %90 : vector<4x6xf32>
    %cst_24 = arith.constant dense<0.000000e+00> : vector<4xf32>
    %92 = vector.multi_reduction <add>, %91, %cst_24 [1] : vector<4x6xf32> to vector<4xf32>
    %93 = vector.shape_cast %92 : vector<4xf32> to vector<4x1xf32>
    %94 = tpu.reciprocal %93 {approx = true} : vector<4x1xf32> -> vector<4x1xf32>
    %95 = vector.broadcast %94 : vector<4x1xf32> to vector<4x6xf32>
    %96 = arith.mulf %91, %95 : vector<4x6xf32>
    %cst_25 = arith.constant 0.000000e+00 : f32
    %97 = vector.broadcast %cst_25 : f32 to vector<4x16xf32>
    %98 = vector.extract_strided_slice %96 {offsets = [0, 0], sizes = [4, 1], strides = [1, 1]} : vector<4x6xf32> to vector<4x1xf32>
    %99 = vector.extract_strided_slice %21 {offsets = [0, 0], sizes = [4, 16], strides = [1, 1]} : vector<4x96xf32> to vector<4x16xf32>
    %100 = vector.broadcast %98 : vector<4x1xf32> to vector<4x16xf32>
    %101 = arith.mulf %100, %99 : vector<4x16xf32>
    %102 = arith.addf %97, %101 : vector<4x16xf32>
    %103 = vector.extract_strided_slice %96 {offsets = [0, 1], sizes = [4, 1], strides = [1, 1]} : vector<4x6xf32> to vector<4x1xf32>
    %104 = vector.extract_strided_slice %21 {offsets = [0, 16], sizes = [4, 16], strides = [1, 1]} : vector<4x96xf32> to vector<4x16xf32>
    %105 = vector.broadcast %103 : vector<4x1xf32> to vector<4x16xf32>
    %106 = arith.mulf %105, %104 : vector<4x16xf32>
    %107 = arith.addf %102, %106 : vector<4x16xf32>
    %108 = vector.extract_strided_slice %96 {offsets = [0, 2], sizes = [4, 1], strides = [1, 1]} : vector<4x6xf32> to vector<4x1xf32>
    %109 = vector.extract_strided_slice %21 {offsets = [0, 32], sizes = [4, 16], strides = [1, 1]} : vector<4x96xf32> to vector<4x16xf32>
    %110 = vector.broadcast %108 : vector<4x1xf32> to vector<4x16xf32>
    %111 = arith.mulf %110, %109 : vector<4x16xf32>
    %112 = arith.addf %107, %111 : vector<4x16xf32>
    %113 = vector.extract_strided_slice %96 {offsets = [0, 3], sizes = [4, 1], strides = [1, 1]} : vector<4x6xf32> to vector<4x1xf32>
    %114 = vector.extract_strided_slice %21 {offsets = [0, 48], sizes = [4, 16], strides = [1, 1]} : vector<4x96xf32> to vector<4x16xf32>
    %115 = vector.broadcast %113 : vector<4x1xf32> to vector<4x16xf32>
    %116 = arith.mulf %115, %114 : vector<4x16xf32>
    %117 = arith.addf %112, %116 : vector<4x16xf32>
    %118 = vector.extract_strided_slice %96 {offsets = [0, 4], sizes = [4, 1], strides = [1, 1]} : vector<4x6xf32> to vector<4x1xf32>
    %119 = vector.extract_strided_slice %21 {offsets = [0, 64], sizes = [4, 16], strides = [1, 1]} : vector<4x96xf32> to vector<4x16xf32>
    %120 = vector.broadcast %118 : vector<4x1xf32> to vector<4x16xf32>
    %121 = arith.mulf %120, %119 : vector<4x16xf32>
    %122 = arith.addf %117, %121 : vector<4x16xf32>
    %123 = vector.extract_strided_slice %96 {offsets = [0, 5], sizes = [4, 1], strides = [1, 1]} : vector<4x6xf32> to vector<4x1xf32>
    %124 = vector.extract_strided_slice %21 {offsets = [0, 80], sizes = [4, 16], strides = [1, 1]} : vector<4x96xf32> to vector<4x16xf32>
    %125 = vector.broadcast %123 : vector<4x1xf32> to vector<4x16xf32>
    %126 = arith.mulf %125, %124 : vector<4x16xf32>
    %127 = arith.addf %122, %126 : vector<4x16xf32>
    %128 = tpu.concatenate %53, %85, %127 in 1 : vector<4x16xf32>, vector<4x16xf32>, vector<4x16xf32> -> vector<4x48xf32>
    %c0_26 = arith.constant 0 : index
    %c0_27 = arith.constant 0 : index
    %129 = vector.load %arg8[%c0_26, %c0_27] : memref<4x48xf32, #tpu.memory_space<vmem>>, vector<4x48xf32>
    tpu.vector_store %arg8[%c0_26, %c0_27], %128 {strides = array<i32>} : memref<4x48xf32, #tpu.memory_space<vmem>>, vector<4x48xf32>,
    return
  }
  func.func @transform_0(%arg0: i32) -> (i32, i32) {
    %c0_i32 = arith.constant 0 : i32
    %c0_i32_0 = arith.constant 0 : i32
    return %arg0, %c0_i32 : i32, i32
  }
  func.func @transform_1(%arg0: i32) -> (i32, i32) {
    %c0_i32 = arith.constant 0 : i32
    %c0_i32_0 = arith.constant 0 : i32
    %c0_i32_1 = arith.constant 0 : i32
    return %c0_i32, %c0_i32_0 : i32, i32
  }
  func.func @transform_2(%arg0: i32) -> (i32, i32) {
    %c0_i32 = arith.constant 0 : i32
    %c0_i32_0 = arith.constant 0 : i32
    %c0_i32_1 = arith.constant 0 : i32
    return %c0_i32, %c0_i32_0 : i32, i32
  }
  func.func @transform_3(%arg0: i32) -> (i32, i32) {
    %c0_i32 = arith.constant 0 : i32
    %c0_i32_0 = arith.constant 0 : i32
    %c0_i32_1 = arith.constant 0 : i32
    return %c0_i32, %c0_i32_0 : i32, i32
  }
  func.func @transform_4(%arg0: i32) -> (i32, i32) {
    %c0_i32 = arith.constant 0 : i32
    %c0_i32_0 = arith.constant 0 : i32
    %c0_i32_1 = arith.constant 0 : i32
    return %c0_i32, %c0_i32_0 : i32, i32
  }
  func.func @transform_5(%arg0: i32) -> (i32, i32) {
    %c0_i32 = arith.constant 0 : i32
    %c0_i32_0 = arith.constant 0 : i32
    %c0_i32_1 = arith.constant 0 : i32
    return %c0_i32, %c0_i32_0 : i32, i32
  }
  func.func @transform_6(%arg0: i32) -> (i32, i32) {
    %c0_i32 = arith.constant 0 : i32
    %c0_i32_0 = arith.constant 0 : i32
    %c0_i32_1 = arith.constant 0 : i32
    return %c0_i32, %c0_i32_0 : i32, i32
  }
  func.func @transform_7(%arg0: i32) -> (i32, i32) {
    %c0_i32 = arith.constant 0 : i32
    %c0_i32_0 = arith.constant 0 : i32
    return %arg0, %c0_i32 : i32, i32
  }
}

</mosaic_0001>

<llo_original>
// kernel: ple_forward.5
$region0: #{ple_forward.5}
  #allocation0 [shape = 'u32[]', space=smem, size = 0x4, offset = 0x4, fixed_abs, tag = 'smem constant byte address 0x4 - core index']
  #allocation1 [shape = 'u32[144,128]{1,0:T(1,128)}', space=vmem, size = 0x12000, scoped, tag = 'internal scratch']
  %s0 = inlined_call_operand.vmem [shape: f32[4,48], index: 0, kind: input, shape index: {}]
  %s1 = inlined_call_operand.vmem [shape: f32[48,206], index: 1, kind: input, shape index: {}]
  %s2 = inlined_call_operand.vmem [shape: f32[1,206], index: 2, kind: input, shape index: {}]
  %s3 = inlined_call_operand.vmem [shape: f32[192,192], index: 3, kind: input, shape index: {}]
  %s4 = inlined_call_operand.vmem [shape: f32[1,192], index: 4, kind: input, shape index: {}]
  %s5 = inlined_call_operand.vmem [shape: f32[192,96], index: 5, kind: input, shape index: {}]
  %s6 = inlined_call_operand.vmem [shape: f32[1,96], index: 6, kind: input, shape index: {}]
  %s7 = inlined_call_operand.vmem [shape: f32[4,48], index: 7, kind: output, shape index: {}]
  %s8 = sld [smem:[#allocation0]]
  $region38: #{ple_forward.5} parent=0
    _
  %s10 = ssub.s32 1, %s8
  %s11 = scalar_select 0, %s10, %s8
  // Predicated region
  $region2: #{ple_forward.5} parent=0 // pred_check
    _
  $region3: #{ple_forward.5} parent=0 // pred_check_branch
    %13 = sbr.rel (0) target = $region5
  $region4: #{ple_forward.5} parent=0 // pred_region
    _
  $region5: #{ple_forward.5} parent=0 // pred_fallthru
    _
  // Predicated region
  $region6: #{ple_forward.5} parent=0 // pred_check
    _
  $region7: #{ple_forward.5} parent=0 // pred_check_branch
    %15 = sbr.rel (0) target = $region9
  $region8: #{ple_forward.5} parent=0 // pred_region
    _
  $region9: #{ple_forward.5} parent=0 // pred_fallthru
    _
  // Predicated region
  $region10: #{ple_forward.5} parent=0 // pred_check
    _
  $region11: #{ple_forward.5} parent=0 // pred_check_branch
    %17 = sbr.rel (0) target = $region13
  $region12: #{ple_forward.5} parent=0 // pred_region
    _
  $region13: #{ple_forward.5} parent=0 // pred_fallthru
    _
  // Predicated region
  $region14: #{ple_forward.5} parent=0 // pred_check
    _
  $region15: #{ple_forward.5} parent=0 // pred_check_branch
    %19 = sbr.rel (0) target = $region17
  $region16: #{ple_forward.5} parent=0 // pred_region
    _
  $region17: #{ple_forward.5} parent=0 // pred_fallthru
    _
  // Predicated region
  $region18: #{ple_forward.5} parent=0 // pred_check
    _
  $region19: #{ple_forward.5} parent=0 // pred_check_branch
    %21 = sbr.rel (0) target = $region21
  $region20: #{ple_forward.5} parent=0 // pred_region
    _
  $region21: #{ple_forward.5} parent=0 // pred_fallthru
    _
  // Predicated region
  $region22: #{ple_forward.5} parent=0 // pred_check
    _
  $region23: #{ple_forward.5} parent=0 // pred_check_branch
    %23 = sbr.rel (0) target = $region25
  $region24: #{ple_forward.5} parent=0 // pred_region
    _
  $region25: #{ple_forward.5} parent=0 // pred_fallthru
    _
  // Predicated region
  $region26: #{ple_forward.5} parent=0 // pred_check
    _
  $region27: #{ple_forward.5} parent=0 // pred_check_branch
    %25 = sbr.rel (0) target = $region29
  $region28: #{ple_forward.5} parent=0 // pred_region
    _
  $region29: #{ple_forward.5} parent=0 // pred_fallthru
    _
  %v26 = vld [vmem:[%s0] sm:$0xf]
  %v27 = vld [vmem:[%s1] sm:$0xff]
  %v28 = vld [vmem:[%s1 + $0x8] sm:$0xff]
  %v29 = vld [vmem:[%s1 + $0x10] sm:$0xff]
  %v30 = vld [vmem:[%s1 + $0x18] sm:$0xff]
  %v31 = vld [vmem:[%s1 + $0x20] sm:$0xff]
  %v32 = vld [vmem:[%s1 + $0x28] sm:$0xff]
  %v33 = vld [vmem:[%s1 + $0x30] sm:$0xff]
  %v34 = vld [vmem:[%s1 + $0x38] sm:$0xff]
  %v35 = vld [vmem:[%s1 + $0x40] sm:$0xff]
  %v36 = vld [vmem:[%s1 + $0x48] sm:$0xff]
  %v37 = vld [vmem:[%s1 + $0x50] sm:$0xff]
  %v38 = vld [vmem:[%s1 + $0x58] sm:$0xff]
  %v39 = vld [vmem:[%s2] sm:$0x3]
  %v41 = vlaneseq
  %v42 = vshrl.u32 %v41, 7
  %v43 = vsub.s32 0, %v42
  %v44 = vrot.slane %v39, %v43
  %v45 = vlaneseq
  %v46 = vshrl.u32 %v45, 7
  %v47 = vsub.s32 1, %v46
  %v48 = vrot.slane %v39, %v47
  %vm51 = vcmask 392192
  %v53 = vsel %vm51, %v26, 0
  %55 = vmatprep.subr.mxu0 %v28
  %56 = vmatpush1.msra.mxu0 %v27
  %57 = vmatprep.subr.mxu0 %v30
  %58 = vmatpush1.msra.mxu0 %v29
  %59 = vmatprep.subr.mxu0 %v32
  %60 = vmatpush1.msra.mxu0 %v31
  %61 = vmatprep.subr.mxu0 %v34
  %62 = vmatpush1.msra.mxu0 %v33
  %63 = vmatprep.subr.mxu0 %v36
  %64 = vmatpush1.msra.mxu0 %v35
  %65 = vmatprep.subr.mxu0 %v38
  %66 = vmatpush1.msra.mxu0 %v37
  %67 = vmatprep.subr.mxu0 0.0
  %68 = vmatpush1.msra.mxu0 0.0
  %69 = vmatprep.subr.mxu0 0.0
  %70 = vmatpush1.msra.mxu0 0.0
  %71 = vmatprep.subr.mxu0 0.0
  %72 = vmatpush1.msra.mxu0 0.0
  %73 = vmatprep.subr.mxu0 0.0
  %74 = vmatpush1.msra.mxu0 0.0
  %75 = vmatprep.subr.mxu0 0.0
  %76 = vmatpush1.msra.mxu0 0.0
  %77 = vmatprep.subr.mxu0 0.0
  %78 = vmatpush1.msra.mxu0 0.0
  %79 = vmatprep.subr.mxu0 0.0
  %80 = vmatpush1.msra.mxu0 0.0
  %81 = vmatprep.subr.mxu0 0.0
  %82 = vmatpush1.msra.mxu0 0.0
  %83 = vmatprep.subr.mxu0 0.0
  %84 = vmatpush1.msra.mxu0 0.0
  %85 = vmatprep.subr.mxu0 0.0
  %86 = vmatpush1.msra.mxu0 0.0
  %87 = vmatprep.subr.mxu0 0.0
  %88 = vmatpush1.msra.mxu0 0.0
  %89 = vmatprep.subr.mxu0 0.0
  %90 = vmatpush1.msra.mxu0 0.0
  %91 = vmatprep.subr.mxu0 0.0
  %92 = vmatpush1.msra.mxu0 0.0
  %93 = vmatprep.subr.mxu0 0.0
  %94 = vmatpush1.msra.mxu0 0.0
  %95 = vmatprep.subr.mxu0 0.0
  %96 = vmatpush1.msra.mxu0 0.0
  %97 = vmatprep.subr.mxu0 0.0
  %98 = vmatpush1.msra.mxu0 0.0
  %99 = vmatprep.subr.mxu0 0.0
  %100 = vmatpush1.msra.mxu0 0.0
  %101 = vmatprep.subr.mxu0 0.0
  %102 = vmatpush1.msra.mxu0 0.0
  %103 = vmatprep.subr.mxu0 0.0
  %104 = vmatpush1.msra.mxu0 0.0
  %105 = vmatprep.subr.mxu0 0.0
  %106 = vmatpush1.msra.mxu0 0.0
  %107 = vmatprep.subr.mxu0 0.0
  %108 = vmatpush1.msra.mxu0 0.0
  %109 = vmatprep.subr.mxu0 0.0
  %110 = vmatpush1.msra.mxu0 0.0
  %111 = vmatprep.subr.mxu0 0.0
  %112 = vmatpush1.msra.mxu0 0.0
  %113 = vmatprep.subr.mxu0 0.0
  %114 = vmatpush1.msra.mxu0 0.0
  %115 = vmatprep.subr.mxu0 0.0
  %116 = vmatpush1.msra.mxu0 0.0
  %117 = vmatprep.subr.mxu0 0.0
  %118 = vmatpush1.msra.mxu0 0.0
  %119 = vmatprep.mubr.f32.mxu0 0.0
  %120 = vmatmul.mubr.f32.gmra.mrb[0].mxu0 %v53
  %v121 = vpop.f32.mrb[0].mxu0
  %v122 = vadd.f32 %v44, %v121
  %v123 = vpop.f32.mrb[0].mxu0
  %v124 = vadd.f32 %v48, %v123
  %125 = vdwg.mxu0
  %v126 = vmax.f32 %v122, 0.0
  %v127 = vmax.f32 %v124, 0.0
  %v128 = vld [vmem:[%s3] sm:$0xff]
  %v129 = vld [vmem:[%s3 + $0x8] sm:$0xff]
  %v130 = vld [vmem:[%s3 + $0x10] sm:$0xff]
  %v131 = vld [vmem:[%s3 + $0x18] sm:$0xff]
  %v132 = vld [vmem:[%s3 + $0x20] sm:$0xff]
  %v133 = vld [vmem:[%s3 + $0x28] sm:$0xff]
  %v134 = vld [vmem:[%s3 + $0x30] sm:$0xff]
  %v135 = vld [vmem:[%s3 + $0x38] sm:$0xff]
  %v136 = vld [vmem:[%s3 + $0x40] sm:$0xff]
  %v137 = vld [vmem:[%s3 + $0x48] sm:$0xff]
  %v138 = vld [vmem:[%s3 + $0x50] sm:$0xff]
  %v139 = vld [vmem:[%s3 + $0x58] sm:$0xff]
  %v140 = vld [vmem:[%s3 + $0x60] sm:$0xff]
  %v141 = vld [vmem:[%s3 + $0x68] sm:$0xff]
  %v142 = vld [vmem:[%s3 + $0x70] sm:$0xff]
  %v143 = vld [vmem:[%s3 + $0x78] sm:$0xff]
  %v144 = vld [vmem:[%s3 + $0x80] sm:$0xff]
  %v145 = vld [vmem:[%s3 + $0x88] sm:$0xff]
  %v146 = vld [vmem:[%s3 + $0x90] sm:$0xff]
  %v147 = vld [vmem:[%s3 + $0x98] sm:$0xff]
  %v148 = vld [vmem:[%s3 + $0xa0] sm:$0xff]
  %v149 = vld [vmem:[%s3 + $0xa8] sm:$0xff]
  %v150 = vld [vmem:[%s3 + $0xb0] sm:$0xff]
  %v151 = vld [vmem:[%s3 + $0xb8] sm:$0xff]
  %v152 = vld [vmem:[%s3 + $0xc0] sm:$0xff]
  %v153 = vld [vmem:[%s3 + $0xc8] sm:$0xff]
  %v154 = vld [vmem:[%s3 + $0xd0] sm:$0xff]
  %v155 = vld [vmem:[%s3 + $0xd8] sm:$0xff]
  %v156 = vld [vmem:[%s3 + $0xe0] sm:$0xff]
  %v157 = vld [vmem:[%s3 + $0xe8] sm:$0xff]
  %v158 = vld [vmem:[%s3 + $0xf0] sm:$0xff]
  %v159 = vld [vmem:[%s3 + $0xf8] sm:$0xff]
  %v160 = vld [vmem:[%s3 + $0x100] sm:$0xff]
  %v161 = vld [vmem:[%s3 + $0x108] sm:$0xff]
  %v162 = vld [vmem:[%s3 + $0x110] sm:$0xff]
  %v163 = vld [vmem:[%s3 + $0x118] sm:$0xff]
  %v164 = vld [vmem:[%s3 + $0x120] sm:$0xff]
  %v165 = vld [vmem:[%s3 + $0x128] sm:$0xff]
  %v166 = vld [vmem:[%s3 + $0x130] sm:$0xff]
  %v167 = vld [vmem:[%s3 + $0x138] sm:$0xff]
  %v168 = vld [vmem:[%s3 + $0x140] sm:$0xff]
  %v169 = vld [vmem:[%s3 + $0x148] sm:$0xff]
  %v170 = vld [vmem:[%s3 + $0x150] sm:$0xff]
  %v171 = vld [vmem:[%s3 + $0x158] sm:$0xff]
  %v172 = vld [vmem:[%s3 + $0x160] sm:$0xff]
  %v173 = vld [vmem:[%s3 + $0x168] sm:$0xff]
  %v174 = vld [vmem:[%s3 + $0x170] sm:$0xff]
  %v175 = vld [vmem:[%s3 + $0x178] sm:$0xff]
  %v176 = vld [vmem:[%s4] sm:$0x3]
  %v178 = vlaneseq
  %v179 = vshrl.u32 %v178, 7
  %v180 = vsub.s32 0, %v179
  %v181 = vrot.slane %v176, %v180
  %v182 = vlaneseq
  %v183 = vshrl.u32 %v182, 7
  %v184 = vsub.s32 1, %v183
  %v185 = vrot.slane %v176, %v184
  %vm188 = vcmask 523264
  %v190 = vsel %vm188, %v127, 0
  %192 = vmatprep.subr.mxu0 %v129
  %193 = vmatpush1.msra.mxu0 %v128
  %194 = vmatprep.subr.mxu0 %v131
  %195 = vmatpush1.msra.mxu0 %v130
  %196 = vmatprep.subr.mxu0 %v133
  %197 = vmatpush1.msra.mxu0 %v132
  %198 = vmatprep.subr.mxu0 %v135
  %199 = vmatpush1.msra.mxu0 %v134
  %200 = vmatprep.subr.mxu0 %v137
  %201 = vmatpush1.msra.mxu0 %v136
  %202 = vmatprep.subr.mxu0 %v139
  %203 = vmatpush1.msra.mxu0 %v138
  %204 = vmatprep.subr.mxu0 %v141
  %205 = vmatpush1.msra.mxu0 %v140
  %206 = vmatprep.subr.mxu0 %v143
  %207 = vmatpush1.msra.mxu0 %v142
  %208 = vmatprep.subr.mxu0 %v145
  %209 = vmatpush1.msra.mxu0 %v144
  %210 = vmatprep.subr.mxu0 %v147
  %211 = vmatpush1.msra.mxu0 %v146
  %212 = vmatprep.subr.mxu0 %v149
  %213 = vmatpush1.msra.mxu0 %v148
  %214 = vmatprep.subr.mxu0 %v151
  %215 = vmatpush1.msra.mxu0 %v150
  %216 = vmatprep.subr.mxu0 %v153
  %217 = vmatpush1.msra.mxu0 %v152
  %218 = vmatprep.subr.mxu0 %v155
  %219 = vmatpush1.msra.mxu0 %v154
  %220 = vmatprep.subr.mxu0 %v157
  %221 = vmatpush1.msra.mxu0 %v156
  %222 = vmatprep.subr.mxu0 %v159
  %223 = vmatpush1.msra.mxu0 %v158
  %224 = vmatprep.subr.mxu0 %v161
  %225 = vmatpush1.msra.mxu0 %v160
  %226 = vmatprep.subr.mxu0 %v163
  %227 = vmatpush1.msra.mxu0 %v162
  %228 = vmatprep.subr.mxu0 %v165
  %229 = vmatpush1.msra.mxu0 %v164
  %230 = vmatprep.subr.mxu0 %v167
  %231 = vmatpush1.msra.mxu0 %v166
  %232 = vmatprep.subr.mxu0 %v169
  %233 = vmatpush1.msra.mxu0 %v168
  %234 = vmatprep.subr.mxu0 %v171
  %235 = vmatpush1.msra.mxu0 %v170
  %236 = vmatprep.subr.mxu0 %v173
  %237 = vmatpush1.msra.mxu0 %v172
  %238 = vmatprep.subr.mxu0 %v175
  %239 = vmatpush1.msra.mxu0 %v174
  %240 = vmatprep.subr.mxu0 0.0
  %241 = vmatpush1.msra.mxu0 0.0
  %242 = vmatprep.subr.mxu0 0.0
  %243 = vmatpush1.msra.mxu0 0.0
  %244 = vmatprep.subr.mxu0 0.0
  %245 = vmatpush1.msra.mxu0 0.0
  %246 = vmatprep.subr.mxu0 0.0
  %247 = vmatpush1.msra.mxu0 0.0
  %248 = vmatprep.subr.mxu0 0.0
  %249 = vmatpush1.msra.mxu0 0.0
  %250 = vmatprep.subr.mxu0 0.0
  %251 = vmatpush1.msra.mxu0 0.0
  %252 = vmatprep.subr.mxu0 0.0
  %253 = vmatpush1.msra.mxu0 0.0
  %254 = vmatprep.subr.mxu0 0.0
  %255 = vmatpush1.msra.mxu0 0.0
  %256 = vmatprep.mubr.f32.mxu0 %v190
  %257 = vmatmul.mubr.f32.gmra.mrb[0].mxu0 %v126
  %v258 = vpop.f32.mrb[0].mxu0
  %v259 = vadd.f32 %v181, %v258
  %v260 = vpop.f32.mrb[0].mxu0
  %v261 = vadd.f32 %v185, %v260
  %262 = vdwg.mxu0
  %v263 = vmax.f32 %v259, 0.0
  %v264 = vmax.f32 %v261, 0.0
  %v265 = vld [vmem:[%s5] sm:$0xff]
  %v266 = vld [vmem:[%s5 + $0x8] sm:$0xff]
  %v267 = vld [vmem:[%s5 + $0x10] sm:$0xff]
  %v268 = vld [vmem:[%s5 + $0x18] sm:$0xff]
  %v269 = vld [vmem:[%s5 + $0x20] sm:$0xff]
  %v270 = vld [vmem:[%s5 + $0x28] sm:$0xff]
  %v271 = vld [vmem:[%s5 + $0x30] sm:$0xff]
  %v272 = vld [vmem:[%s5 + $0x38] sm:$0xff]
  %v273 = vld [vmem:[%s5 + $0x40] sm:$0xff]
  %v274 = vld [vmem:[%s5 + $0x48] sm:$0xff]
  %v275 = vld [vmem:[%s5 + $0x50] sm:$0xff]
  %v276 = vld [vmem:[%s5 + $0x58] sm:$0xff]
  %v277 = vld [vmem:[%s5 + $0x60] sm:$0xff]
  %v278 = vld [vmem:[%s5 + $0x68] sm:$0xff]
  %v279 = vld [vmem:[%s5 + $0x70] sm:$0xff]
  %v280 = vld [vmem:[%s5 + $0x78] sm:$0xff]
  %v281 = vld [vmem:[%s5 + $0x80] sm:$0xff]
  %v282 = vld [vmem:[%s5 + $0x88] sm:$0xff]
  %v283 = vld [vmem:[%s5 + $0x90] sm:$0xff]
  %v284 = vld [vmem:[%s5 + $0x98] sm:$0xff]
  %v285 = vld [vmem:[%s5 + $0xa0] sm:$0xff]
  %v286 = vld [vmem:[%s5 + $0xa8] sm:$0xff]
  %v287 = vld [vmem:[%s5 + $0xb0] sm:$0xff]
  %v288 = vld [vmem:[%s5 + $0xb8] sm:$0xff]
  %v289 = vld [vmem:[%s6] sm:$0x1]
  %v291 = vlaneseq
  %v292 = vshrl.u32 %v291, 7
  %v293 = vsub.s32 0, %v292
  %v294 = vrot.slane %v289, %v293
  %v297 = vsel %vm188, %v264, 0
  %299 = vmatprep.subr.mxu0 0.0
  %300 = vmatpush1.msra.mxu0 %v265
  %301 = vmatprep.subr.mxu0 0.0
  %302 = vmatpush1.msra.mxu0 %v266
  %303 = vmatprep.subr.mxu0 0.0
  %304 = vmatpush1.msra.mxu0 %v267
  %305 = vmatprep.subr.mxu0 0.0
  %306 = vmatpush1.msra.mxu0 %v268
  %307 = vmatprep.subr.mxu0 0.0
  %308 = vmatpush1.msra.mxu0 %v269
  %309 = vmatprep.subr.mxu0 0.0
  %310 = vmatpush1.msra.mxu0 %v270
  %311 = vmatprep.subr.mxu0 0.0
  %312 = vmatpush1.msra.mxu0 %v271
  %313 = vmatprep.subr.mxu0 0.0
  %314 = vmatpush1.msra.mxu0 %v272
  %315 = vmatprep.subr.mxu0 0.0
  %316 = vmatpush1.msra.mxu0 %v273
  %317 = vmatprep.subr.mxu0 0.0
  %318 = vmatpush1.msra.mxu0 %v274
  %319 = vmatprep.subr.mxu0 0.0
  %320 = vmatpush1.msra.mxu0 %v275
  %321 = vmatprep.subr.mxu0 0.0
  %322 = vmatpush1.msra.mxu0 %v276
  %323 = vmatprep.subr.mxu0 0.0
  %324 = vmatpush1.msra.mxu0 %v277
  %325 = vmatprep.subr.mxu0 0.0
  %326 = vmatpush1.msra.mxu0 %v278
  %327 = vmatprep.subr.mxu0 0.0
  %328 = vmatpush1.msra.mxu0 %v279
  %329 = vmatprep.subr.mxu0 0.0
  %330 = vmatpush1.msra.mxu0 %v280
  %331 = vmatprep.subr.mxu0 0.0
  %332 = vmatpush1.msra.mxu0 %v281
  %333 = vmatprep.subr.mxu0 0.0
  %334 = vmatpush1.msra.mxu0 %v282
  %335 = vmatprep.subr.mxu0 0.0
  %336 = vmatpush1.msra.mxu0 %v283
  %337 = vmatprep.subr.mxu0 0.0
  %338 = vmatpush1.msra.mxu0 %v284
  %339 = vmatprep.subr.mxu0 0.0
  %340 = vmatpush1.msra.mxu0 %v285
  %341 = vmatprep.subr.mxu0 0.0
  %342 = vmatpush1.msra.mxu0 %v286
  %343 = vmatprep.subr.mxu0 0.0
  %344 = vmatpush1.msra.mxu0 %v287
  %345 = vmatprep.subr.mxu0 0.0
  %346 = vmatpush1.msra.mxu0 %v288
  %347 = vmatprep.subr.mxu0 0.0
  %348 = vmatpush1.msra.mxu0 0.0
  %349 = vmatprep.subr.mxu0 0.0
  %350 = vmatpush1.msra.mxu0 0.0
  %351 = vmatprep.subr.mxu0 0.0
  %352 = vmatpush1.msra.mxu0 0.0
  %353 = vmatprep.subr.mxu0 0.0
  %354 = vmatpush1.msra.mxu0 0.0
  %355 = vmatprep.subr.mxu0 0.0
  %356 = vmatpush1.msra.mxu0 0.0
  %357 = vmatprep.subr.mxu0 0.0
  %358 = vmatpush1.msra.mxu0 0.0
  %359 = vmatprep.subr.mxu0 0.0
  %360 = vmatpush1.msra.mxu0 0.0
  %361 = vmatprep.subr.mxu0 0.0
  %362 = vmatpush1.msra.mxu0 0.0
  %363 = vmatprep.mubr.f32.mxu0 %v297
  %364 = vmatmul.mubr.f32.gmra.mrb[0].mxu0 %v263
  %v365 = vpop.f32.mrb[0].mxu0
  %v366 = vadd.f32 %v294, %v365
  %v367 = vpop.f32.mrb[0].mxu0
  %368 = vdwg.mxu0
  %vm369 = vcmask 552448
  %v370 = vsel %vm369, %v124, -inf
  %371 = vmax.xlane.f32.xlu0 %v370
  %v372 = vpop.xlane.xlu0 %371
  %v373 = vsub.f32 %v124, %v372
  %v374 = vmul.f32 %v373, 1.442695
  %v375 = vpow.pop %v374
  %377 = vrot.lane.b32.xlu0 %v375, 64
  %v378 = vpop.permute.xlu0 %377
  %vm380 = vcmask 27648
  %v381 = vsel %vm380, %v378, 0.0
  %382 = vadd.xlane.f32.xlu0 %v381
  %v383 = vpop.xlane.xlu0 %382
  %v384 = vrcp.pop %v383
  %v385 = vmul.f32 %v375, %v384
  %387 = vset.pattern.permute.xlu0 64
  %388 = vperm.xlu0 %387, %v385
  %v389 = vpop.permute.xlu0 %388
  %v391 = vmul.f32 %v389, %v366
  %v392 = vadd.f32 %v391, 0.0
  %393 = vset.pattern.permute.xlu0 65
  %394 = vperm.xlu0 %393, %v385
  %v395 = vpop.permute.xlu0 %394
  %v397 = vmul.f32 %v395, %v366
  %399 = vrot.lane.b32.xlu0 %v397, 112
  %v400 = vpop.permute.xlu0 %399
  %v402 = vadd.f32 %v392, %v400
  %403 = vset.pattern.permute.xlu0 66
  %404 = vperm.xlu0 %403, %v385
  %v405 = vpop.permute.xlu0 %404
  %v407 = vmul.f32 %v405, %v366
  %409 = vrot.lane.b32.xlu0 %v407, 64
  %v410 = vpop.permute.xlu0 %409
  %v412 = vadd.f32 %v402, %v410
  %413 = vset.pattern.permute.xlu0 67
  %414 = vperm.xlu0 %413, %v385
  %v415 = vpop.permute.xlu0 %414
  %v417 = vmul.f32 %v415, %v366
  %419 = vrot.lane.b32.xlu0 %v417, 48
  %v420 = vpop.permute.xlu0 %419
  %v422 = vadd.f32 %v412, %v420
  %vm423 = vcmask 585248
  %v424 = vsel %vm423, %v124, -inf
  %425 = vmax.xlane.f32.xlu0 %v424
  %v426 = vpop.xlane.xlu0 %425
  %v427 = vsub.f32 %v124, %v426
  %v428 = vmul.f32 %v427, 1.442695
  %v429 = vpow.pop %v428
  %431 = vrot.lane.b32.xlu0 %v429, 60
  %v432 = vpop.permute.xlu0 %431
  %v434 = vsel %vm380, %v432, 0.0
  %435 = vadd.xlane.f32.xlu0 %v434
  %v436 = vpop.xlane.xlu0 %435
  %v437 = vrcp.pop %v436
  %v438 = vmul.f32 %v429, %v437
  %440 = vset.pattern.permute.xlu0 68
  %441 = vperm.xlu0 %440, %v438
  %v442 = vpop.permute.xlu0 %441
  %v444 = vmul.f32 %v442, %v366
  %v445 = vadd.f32 %v444, 0.0
  %446 = vset.pattern.permute.xlu0 69
  %447 = vperm.xlu0 %446, %v438
  %v448 = vpop.permute.xlu0 %447
  %v450 = vmul.f32 %v448, %v366
  %452 = vrot.lane.b32.xlu0 %v450, 112
  %v453 = vpop.permute.xlu0 %452
  %v455 = vadd.f32 %v445, %v453
  %456 = vset.pattern.permute.xlu0 70
  %457 = vperm.xlu0 %456, %v438
  %v458 = vpop.permute.xlu0 %457
  %v460 = vmul.f32 %v458, %v366
  %462 = vrot.lane.b32.xlu0 %v460, 96
  %v463 = vpop.permute.xlu0 %462
  %v465 = vadd.f32 %v455, %v463
  %466 = vset.pattern.permute.xlu0 71
  %467 = vperm.xlu0 %466, %v438
  %v468 = vpop.permute.xlu0 %467
  %v470 = vmul.f32 %v468, %v366
  %472 = vrot.lane.b32.xlu0 %v470, 80
  %v473 = vpop.permute.xlu0 %472
  %v475 = vadd.f32 %v465, %v473
  %vm476 = vcmask 634432
  %v477 = vsel %vm476, %v124, -inf
  %478 = vmax.xlane.f32.xlu0 %v477
  %v479 = vpop.xlane.xlu0 %478
  %v480 = vsub.f32 %v124, %v479
  %v481 = vmul.f32 %v480, 1.442695
  %v482 = vpow.pop %v481
  %484 = vrot.lane.b32.xlu0 %v482, 56
  %v485 = vpop.permute.xlu0 %484
  %vm487 = vcmask 44032
  %v488 = vsel %vm487, %v485, 0.0
  %489 = vadd.xlane.f32.xlu0 %v488
  %v490 = vpop.xlane.xlu0 %489
  %v491 = vrcp.pop %v490
  %v492 = vmul.f32 %v482, %v491
  %494 = vset.pattern.permute.xlu0 72
  %495 = vperm.xlu0 %494, %v492
  %v496 = vpop.permute.xlu0 %495
  %v498 = vmul.f32 %v496, %v366
  %v499 = vadd.f32 %v498, 0.0
  %500 = vset.pattern.permute.xlu0 73
  %501 = vperm.xlu0 %500, %v492
  %v502 = vpop.permute.xlu0 %501
  %v504 = vmul.f32 %v502, %v366
  %506 = vrot.lane.b32.xlu0 %v504, 112
  %v507 = vpop.permute.xlu0 %506
  %v509 = vadd.f32 %v499, %v507
  %510 = vset.pattern.permute.xlu0 74
  %511 = vperm.xlu0 %510, %v492
  %v512 = vpop.permute.xlu0 %511
  %v514 = vmul.f32 %v512, %v366
  %516 = vrot.lane.b32.xlu0 %v514, 96
  %v517 = vpop.permute.xlu0 %516
  %v519 = vadd.f32 %v509, %v517
  %520 = vset.pattern.permute.xlu0 75
  %521 = vperm.xlu0 %520, %v492
  %v522 = vpop.permute.xlu0 %521
  %v524 = vmul.f32 %v522, %v366
  %526 = vrot.lane.b32.xlu0 %v524, 80
  %v527 = vpop.permute.xlu0 %526
  %v529 = vadd.f32 %v519, %v527
  %530 = vset.pattern.permute.xlu0 76
  %531 = vperm.xlu0 %530, %v492
  %v532 = vpop.permute.xlu0 %531
  %v534 = vmul.f32 %v532, %v366
  %536 = vrot.lane.b32.xlu0 %v534, 64
  %v537 = vpop.permute.xlu0 %536
  %v539 = vadd.f32 %v529, %v537
  %540 = vset.pattern.permute.xlu0 77
  %541 = vperm.xlu0 %540, %v492
  %v542 = vpop.permute.xlu0 %541
  %v544 = vmul.f32 %v542, %v366
  %546 = vrot.lane.b32.xlu0 %v544, 48
  %v547 = vpop.permute.xlu0 %546
  %v549 = vadd.f32 %v539, %v547
  %551 = vrot.lane.b32.xlu0 %v475, 112
  %v552 = vpop.permute.xlu0 %551
  %555 = vrot.lane.b32.xlu0 %v549, 32
  %v556 = vpop.permute.xlu0 %555
  %vm558 = vcmask 130048
  %v559 = vsel %vm558, %v422, %v552
  %vm560 = vcmask 261120
  %v561 = vsel %vm560, %v559, %v556
  %vm562 = vcmask 388096
  %563 = vst.msk [vmem:[%s7] sm:$0xf] %vm562, %v561
  // Predicated region
  $region30: #{ple_forward.5} parent=0 // pred_check
    _
  $region31: #{ple_forward.5} parent=0 // pred_check_branch
    %565 = sbr.rel (0) target = $region33
  $region32: #{ple_forward.5} parent=0 // pred_region
    _
  $region33: #{ple_forward.5} parent=0 // pred_fallthru
    _
  // Predicated region
  $region34: #{ple_forward.5} parent=0 // pred_check
    _
  $region35: #{ple_forward.5} parent=0 // pred_check_branch
    %567 = sbr.rel (0) target = $region37
  $region36: #{ple_forward.5} parent=0 // pred_region
    _
  $region37: #{ple_forward.5} parent=0 // pred_fallthru
    _

// kernel: ple_forward.7
$region0: #{ple_forward.7}
  #allocation0 [shape = 'u32[]', space=smem, size = 0x4, offset = 0x4, fixed_abs, tag = 'smem constant byte address 0x4 - core index']
  #allocation1 [shape = 'u32[144,128]{1,0:T(1,128)}', space=vmem, size = 0x12000, scoped, tag = 'internal scratch']
  %s0 = inlined_call_operand.vmem [shape: f32[4,32], index: 0, kind: input, shape index: {}]
  %s1 = inlined_call_operand.vmem [shape: f32[32,64], index: 1, kind: input, shape index: {}]
  %s2 = inlined_call_operand.vmem [shape: f32[1,64], index: 2, kind: input, shape index: {}]
  %s3 = inlined_call_operand.vmem [shape: f32[64,64], index: 3, kind: input, shape index: {}]
  %s4 = inlined_call_operand.vmem [shape: f32[1,64], index: 4, kind: input, shape index: {}]
  %s5 = inlined_call_operand.vmem [shape: f32[64,2], index: 5, kind: input, shape index: {}]
  %s6 = inlined_call_operand.vmem [shape: f32[1,2], index: 6, kind: input, shape index: {}]
  %s7 = inlined_call_operand.vmem [shape: f32[4,2], index: 7, kind: output, shape index: {}]
  %s8 = sld [smem:[#allocation0]]
  $region38: #{ple_forward.7} parent=0
    _
  %s10 = ssub.s32 1, %s8
  %s11 = scalar_select 0, %s10, %s8
  // Predicated region
  $region2: #{ple_forward.7} parent=0 // pred_check
    _
  $region3: #{ple_forward.7} parent=0 // pred_check_branch
    %13 = sbr.rel (0) target = $region5
  $region4: #{ple_forward.7} parent=0 // pred_region
    _
  $region5: #{ple_forward.7} parent=0 // pred_fallthru
    _
  // Predicated region
  $region6: #{ple_forward.7} parent=0 // pred_check
    _
  $region7: #{ple_forward.7} parent=0 // pred_check_branch
    %15 = sbr.rel (0) target = $region9
  $region8: #{ple_forward.7} parent=0 // pred_region
    _
  $region9: #{ple_forward.7} parent=0 // pred_fallthru
    _
  // Predicated region
  $region10: #{ple_forward.7} parent=0 // pred_check
    _
  $region11: #{ple_forward.7} parent=0 // pred_check_branch
    %17 = sbr.rel (0) target = $region13
  $region12: #{ple_forward.7} parent=0 // pred_region
    _
  $region13: #{ple_forward.7} parent=0 // pred_fallthru
    _
  // Predicated region
  $region14: #{ple_forward.7} parent=0 // pred_check
    _
  $region15: #{ple_forward.7} parent=0 // pred_check_branch
    %19 = sbr.rel (0) target = $region17
  $region16: #{ple_forward.7} parent=0 // pred_region
    _
  $region17: #{ple_forward.7} parent=0 // pred_fallthru
    _
  // Predicated region
  $region18: #{ple_forward.7} parent=0 // pred_check
    _
  $region19: #{ple_forward.7} parent=0 // pred_check_branch
    %21 = sbr.rel (0) target = $region21
  $region20: #{ple_forward.7} parent=0 // pred_region
    _
  $region21: #{ple_forward.7} parent=0 // pred_fallthru
    _
  // Predicated region
  $region22: #{ple_forward.7} parent=0 // pred_check
    _
  $region23: #{ple_forward.7} parent=0 // pred_check_branch
    %23 = sbr.rel (0) target = $region25
  $region24: #{ple_forward.7} parent=0 // pred_region
    _
  $region25: #{ple_forward.7} parent=0 // pred_fallthru
    _
  // Predicated region
  $region26: #{ple_forward.7} parent=0 // pred_check
    _
  $region27: #{ple_forward.7} parent=0 // pred_check_branch
    %25 = sbr.rel (0) target = $region29
  $region28: #{ple_forward.7} parent=0 // pred_region
    _
  $region29: #{ple_forward.7} parent=0 // pred_fallthru
    _
  %v26 = vld [vmem:[%s0] sm:$0xf]
  %v27 = vld [vmem:[%s1] sm:$0xff]
  %v28 = vld [vmem:[%s1 + $0x8] sm:$0xff]
  %v29 = vld [vmem:[%s1 + $0x10] sm:$0xff]
  %v30 = vld [vmem:[%s1 + $0x18] sm:$0xff]
  %v31 = vld [vmem:[%s2] sm:$0x1]
  %v33 = vlaneseq
  %v34 = vshrl.u32 %v33, 7
  %v35 = vsub.s32 0, %v34
  %v36 = vrot.slane %v31, %v35
  %vm38 = vcmask 261120
  %v40 = vsel %vm38, %v26, 0
  %42 = vmatprep.subr.mxu0 0.0
  %43 = vmatpush1.msra.mxu0 %v27
  %44 = vmatprep.subr.mxu0 0.0
  %45 = vmatpush1.msra.mxu0 %v28
  %46 = vmatprep.subr.mxu0 0.0
  %47 = vmatpush1.msra.mxu0 %v29
  %48 = vmatprep.subr.mxu0 0.0
  %49 = vmatpush1.msra.mxu0 %v30
  %50 = vmatprep.subr.mxu0 0.0
  %51 = vmatpush1.msra.mxu0 0.0
  %52 = vmatprep.subr.mxu0 0.0
  %53 = vmatpush1.msra.mxu0 0.0
  %54 = vmatprep.subr.mxu0 0.0
  %55 = vmatpush1.msra.mxu0 0.0
  %56 = vmatprep.subr.mxu0 0.0
  %57 = vmatpush1.msra.mxu0 0.0
  %58 = vmatprep.subr.mxu0 0.0
  %59 = vmatpush1.msra.mxu0 0.0
  %60 = vmatprep.subr.mxu0 0.0
  %61 = vmatpush1.msra.mxu0 0.0
  %62 = vmatprep.subr.mxu0 0.0
  %63 = vmatpush1.msra.mxu0 0.0
  %64 = vmatprep.subr.mxu0 0.0
  %65 = vmatpush1.msra.mxu0 0.0
  %66 = vmatprep.subr.mxu0 0.0
  %67 = vmatpush1.msra.mxu0 0.0
  %68 = vmatprep.subr.mxu0 0.0
  %69 = vmatpush1.msra.mxu0 0.0
  %70 = vmatprep.subr.mxu0 0.0
  %71 = vmatpush1.msra.mxu0 0.0
  %72 = vmatprep.subr.mxu0 0.0
  %73 = vmatpush1.msra.mxu0 0.0
  %74 = vmatprep.subr.mxu0 0.0
  %75 = vmatpush1.msra.mxu0 0.0
  %76 = vmatprep.subr.mxu0 0.0
  %77 = vmatpush1.msra.mxu0 0.0
  %78 = vmatprep.subr.mxu0 0.0
  %79 = vmatpush1.msra.mxu0 0.0
  %80 = vmatprep.subr.mxu0 0.0
  %81 = vmatpush1.msra.mxu0 0.0
  %82 = vmatprep.subr.mxu0 0.0
  %83 = vmatpush1.msra.mxu0 0.0
  %84 = vmatprep.subr.mxu0 0.0
  %85 = vmatpush1.msra.mxu0 0.0
  %86 = vmatprep.subr.mxu0 0.0
  %87 = vmatpush1.msra.mxu0 0.0
  %88 = vmatprep.subr.mxu0 0.0
  %89 = vmatpush1.msra.mxu0 0.0
  %90 = vmatprep.subr.mxu0 0.0
  %91 = vmatpush1.msra.mxu0 0.0
  %92 = vmatprep.subr.mxu0 0.0
  %93 = vmatpush1.msra.mxu0 0.0
  %94 = vmatprep.subr.mxu0 0.0
  %95 = vmatpush1.msra.mxu0 0.0
  %96 = vmatprep.subr.mxu0 0.0
  %97 = vmatpush1.msra.mxu0 0.0
  %98 = vmatprep.subr.mxu0 0.0
  %99 = vmatpush1.msra.mxu0 0.0
  %100 = vmatprep.subr.mxu0 0.0
  %101 = vmatpush1.msra.mxu0 0.0
  %102 = vmatprep.subr.mxu0 0.0
  %103 = vmatpush1.msra.mxu0 0.0
  %104 = vmatprep.subr.mxu0 0.0
  %105 = vmatpush1.msra.mxu0 0.0
  %106 = vmatprep.mubr.f32.mxu0 0.0
  %107 = vmatmul.mubr.f32.gmra.mrb[0].mxu0 %v40
  %v108 = vpop.f32.mrb[0].mxu0
  %v109 = vadd.f32 %v36, %v108
  %v110 = vpop.f32.mrb[0].mxu0
  %111 = vdwg.mxu0
  %v112 = vmax.f32 %v109, 0.0
  %v113 = vld [vmem:[%s3] sm:$0xff]
  %v114 = vld [vmem:[%s3 + $0x8] sm:$0xff]
  %v115 = vld [vmem:[%s3 + $0x10] sm:$0xff]
  %v116 = vld [vmem:[%s3 + $0x18] sm:$0xff]
  %v117 = vld [vmem:[%s3 + $0x20] sm:$0xff]
  %v118 = vld [vmem:[%s3 + $0x28] sm:$0xff]
  %v119 = vld [vmem:[%s3 + $0x30] sm:$0xff]
  %v120 = vld [vmem:[%s3 + $0x38] sm:$0xff]
  %v121 = vld [vmem:[%s4] sm:$0x1]
  %v123 = vlaneseq
  %v124 = vshrl.u32 %v123, 7
  %v125 = vsub.s32 0, %v124
  %v126 = vrot.slane %v121, %v125
  %vm128 = vcmask 523264
  %v130 = vsel %vm128, %v112, 0
  %132 = vmatprep.subr.mxu0 0.0
  %133 = vmatpush1.msra.mxu0 %v113
  %134 = vmatprep.subr.mxu0 0.0
  %135 = vmatpush1.msra.mxu0 %v114
  %136 = vmatprep.subr.mxu0 0.0
  %137 = vmatpush1.msra.mxu0 %v115
  %138 = vmatprep.subr.mxu0 0.0
  %139 = vmatpush1.msra.mxu0 %v116
  %140 = vmatprep.subr.mxu0 0.0
  %141 = vmatpush1.msra.mxu0 %v117
  %142 = vmatprep.subr.mxu0 0.0
  %143 = vmatpush1.msra.mxu0 %v118
  %144 = vmatprep.subr.mxu0 0.0
  %145 = vmatpush1.msra.mxu0 %v119
  %146 = vmatprep.subr.mxu0 0.0
  %147 = vmatpush1.msra.mxu0 %v120
  %148 = vmatprep.subr.mxu0 0.0
  %149 = vmatpush1.msra.mxu0 0.0
  %150 = vmatprep.subr.mxu0 0.0
  %151 = vmatpush1.msra.mxu0 0.0
  %152 = vmatprep.subr.mxu0 0.0
  %153 = vmatpush1.msra.mxu0 0.0
  %154 = vmatprep.subr.mxu0 0.0
  %155 = vmatpush1.msra.mxu0 0.0
  %156 = vmatprep.subr.mxu0 0.0
  %157 = vmatpush1.msra.mxu0 0.0
  %158 = vmatprep.subr.mxu0 0.0
  %159 = vmatpush1.msra.mxu0 0.0
  %160 = vmatprep.subr.mxu0 0.0
  %161 = vmatpush1.msra.mxu0 0.0
  %162 = vmatprep.subr.mxu0 0.0
  %163 = vmatpush1.msra.mxu0 0.0
  %164 = vmatprep.subr.mxu0 0.0
  %165 = vmatpush1.msra.mxu0 0.0
  %166 = vmatprep.subr.mxu0 0.0
  %167 = vmatpush1.msra.mxu0 0.0
  %168 = vmatprep.subr.mxu0 0.0
  %169 = vmatpush1.msra.mxu0 0.0
  %170 = vmatprep.subr.mxu0 0.0
  %171 = vmatpush1.msra.mxu0 0.0
  %172 = vmatprep.subr.mxu0 0.0
  %173 = vmatpush1.msra.mxu0 0.0
  %174 = vmatprep.subr.mxu0 0.0
  %175 = vmatpush1.msra.mxu0 0.0
  %176 = vmatprep.subr.mxu0 0.0
  %177 = vmatpush1.msra.mxu0 0.0
  %178 = vmatprep.subr.mxu0 0.0
  %179 = vmatpush1.msra.mxu0 0.0
  %180 = vmatprep.subr.mxu0 0.0
  %181 = vmatpush1.msra.mxu0 0.0
  %182 = vmatprep.subr.mxu0 0.0
  %183 = vmatpush1.msra.mxu0 0.0
  %184 = vmatprep.subr.mxu0 0.0
  %185 = vmatpush1.msra.mxu0 0.0
  %186 = vmatprep.subr.mxu0 0.0
  %187 = vmatpush1.msra.mxu0 0.0
  %188 = vmatprep.subr.mxu0 0.0
  %189 = vmatpush1.msra.mxu0 0.0
  %190 = vmatprep.subr.mxu0 0.0
  %191 = vmatpush1.msra.mxu0 0.0
  %192 = vmatprep.subr.mxu0 0.0
  %193 = vmatpush1.msra.mxu0 0.0
  %194 = vmatprep.subr.mxu0 0.0
  %195 = vmatpush1.msra.mxu0 0.0
  %196 = vmatprep.mubr.f32.mxu0 0.0
  %197 = vmatmul.mubr.f32.gmra.mrb[0].mxu0 %v130
  %v198 = vpop.f32.mrb[0].mxu0
  %v199 = vadd.f32 %v126, %v198
  %v200 = vpop.f32.mrb[0].mxu0
  %201 = vdwg.mxu0
  %v202 = vmax.f32 %v199, 0.0
  %v203 = vld [vmem:[%s5] sm:$0xff]
  %v204 = vld [vmem:[%s5 + $0x8] sm:$0xff]
  %v205 = vld [vmem:[%s5 + $0x10] sm:$0xff]
  %v206 = vld [vmem:[%s5 + $0x18] sm:$0xff]
  %v207 = vld [vmem:[%s5 + $0x20] sm:$0xff]
  %v208 = vld [vmem:[%s5 + $0x28] sm:$0xff]
  %v209 = vld [vmem:[%s5 + $0x30] sm:$0xff]
  %v210 = vld [vmem:[%s5 + $0x38] sm:$0xff]
  %v211 = vld [vmem:[%s6] sm:$0x1]
  %v213 = vlaneseq
  %v214 = vshrl.u32 %v213, 7
  %v215 = vsub.s32 0, %v214
  %v216 = vrot.slane %v211, %v215
  %v219 = vsel %vm128, %v202, 0
  %221 = vmatprep.subr.mxu0 0.0
  %222 = vmatpush1.msra.mxu0 %v203
  %223 = vmatprep.subr.mxu0 0.0
  %224 = vmatpush1.msra.mxu0 %v204
  %225 = vmatprep.subr.mxu0 0.0
  %226 = vmatpush1.msra.mxu0 %v205
  %227 = vmatprep.subr.mxu0 0.0
  %228 = vmatpush1.msra.mxu0 %v206
  %229 = vmatprep.subr.mxu0 0.0
  %230 = vmatpush1.msra.mxu0 %v207
  %231 = vmatprep.subr.mxu0 0.0
  %232 = vmatpush1.msra.mxu0 %v208
  %233 = vmatprep.subr.mxu0 0.0
  %234 = vmatpush1.msra.mxu0 %v209
  %235 = vmatprep.subr.mxu0 0.0
  %236 = vmatpush1.msra.mxu0 %v210
  %237 = vmatprep.subr.mxu0 0.0
  %238 = vmatpush1.msra.mxu0 0.0
  %239 = vmatprep.subr.mxu0 0.0
  %240 = vmatpush1.msra.mxu0 0.0
  %241 = vmatprep.subr.mxu0 0.0
  %242 = vmatpush1.msra.mxu0 0.0
  %243 = vmatprep.subr.mxu0 0.0
  %244 = vmatpush1.msra.mxu0 0.0
  %245 = vmatprep.subr.mxu0 0.0
  %246 = vmatpush1.msra.mxu0 0.0
  %247 = vmatprep.subr.mxu0 0.0
  %248 = vmatpush1.msra.mxu0 0.0
  %249 = vmatprep.subr.mxu0 0.0
  %250 = vmatpush1.msra.mxu0 0.0
  %251 = vmatprep.subr.mxu0 0.0
  %252 = vmatpush1.msra.mxu0 0.0
  %253 = vmatprep.subr.mxu0 0.0
  %254 = vmatpush1.msra.mxu0 0.0
  %255 = vmatprep.subr.mxu0 0.0
  %256 = vmatpush1.msra.mxu0 0.0
  %257 = vmatprep.subr.mxu0 0.0
  %258 = vmatpush1.msra.mxu0 0.0
  %259 = vmatprep.subr.mxu0 0.0
  %260 = vmatpush1.msra.mxu0 0.0
  %261 = vmatprep.subr.mxu0 0.0
  %262 = vmatpush1.msra.mxu0 0.0
  %263 = vmatprep.subr.mxu0 0.0
  %264 = vmatpush1.msra.mxu0 0.0
  %265 = vmatprep.subr.mxu0 0.0
  %266 = vmatpush1.msra.mxu0 0.0
  %267 = vmatprep.subr.mxu0 0.0
  %268 = vmatpush1.msra.mxu0 0.0
  %269 = vmatprep.subr.mxu0 0.0
  %270 = vmatpush1.msra.mxu0 0.0
  %271 = vmatprep.subr.mxu0 0.0
  %272 = vmatpush1.msra.mxu0 0.0
  %273 = vmatprep.subr.mxu0 0.0
  %274 = vmatpush1.msra.mxu0 0.0
  %275 = vmatprep.subr.mxu0 0.0
  %276 = vmatpush1.msra.mxu0 0.0
  %277 = vmatprep.subr.mxu0 0.0
  %278 = vmatpush1.msra.mxu0 0.0
  %279 = vmatprep.subr.mxu0 0.0
  %280 = vmatpush1.msra.mxu0 0.0
  %281 = vmatprep.subr.mxu0 0.0
  %282 = vmatpush1.msra.mxu0 0.0
  %283 = vmatprep.subr.mxu0 0.0
  %284 = vmatpush1.msra.mxu0 0.0
  %285 = vmatprep.mubr.f32.mxu0 0.0
  %286 = vmatmul.mubr.f32.gmra.mrb[0].mxu0 %v219
  %v287 = vpop.f32.mrb[0].mxu0
  %v288 = vadd.f32 %v216, %v287
  %v289 = vpop.f32.mrb[0].mxu0
  %290 = vdwg.mxu0
  %v291 = vxor.u32 %v288, 2147483648
  %v292 = vmul.f32 %v291, 1.442695
  %v293 = vpow.pop %v292
  %v294 = vadd.f32 %v293, 1.0
  %v295 = vrcp.pop %v294
  %v296 = vmul.f32 1.0, %v295
  %vm297 = vcmask 11264
  %298 = vst.msk [vmem:[%s7] sm:$0xf] %vm297, %v296
  // Predicated region
  $region30: #{ple_forward.7} parent=0 // pred_check
    _
  $region31: #{ple_forward.7} parent=0 // pred_check_branch
    %300 = sbr.rel (0) target = $region33
  $region32: #{ple_forward.7} parent=0 // pred_region
    _
  $region33: #{ple_forward.7} parent=0 // pred_fallthru
    _
  // Predicated region
  $region34: #{ple_forward.7} parent=0 // pred_check
    _
  $region35: #{ple_forward.7} parent=0 // pred_check_branch
    %302 = sbr.rel (0) target = $region37
  $region36: #{ple_forward.7} parent=0 // pred_region
    _
  $region37: #{ple_forward.7} parent=0 // pred_fallthru
    _

// kernel: ple_forward.6
$region0: #{ple_forward.6}
  #allocation0 [shape = 'u32[]', space=smem, size = 0x4, offset = 0x4, fixed_abs, tag = 'smem constant byte address 0x4 - core index']
  #allocation1 [shape = 'u32[144,128]{1,0:T(1,128)}', space=vmem, size = 0x12000, scoped, tag = 'internal scratch']
  %s0 = inlined_call_operand.vmem [shape: f32[4,48], index: 0, kind: input, shape index: {}]
  %s1 = inlined_call_operand.vmem [shape: f32[48,200], index: 1, kind: input, shape index: {}]
  %s2 = inlined_call_operand.vmem [shape: f32[1,200], index: 2, kind: input, shape index: {}]
  %s3 = inlined_call_operand.vmem [shape: f32[192,192], index: 3, kind: input, shape index: {}]
  %s4 = inlined_call_operand.vmem [shape: f32[1,192], index: 4, kind: input, shape index: {}]
  %s5 = inlined_call_operand.vmem [shape: f32[192,96], index: 5, kind: input, shape index: {}]
  %s6 = inlined_call_operand.vmem [shape: f32[1,96], index: 6, kind: input, shape index: {}]
  %s7 = inlined_call_operand.vmem [shape: f32[4,32], index: 7, kind: output, shape index: {}]
  %s8 = sld [smem:[#allocation0]]
  $region38: #{ple_forward.6} parent=0
    _
  %s10 = ssub.s32 1, %s8
  %s11 = scalar_select 0, %s10, %s8
  // Predicated region
  $region2: #{ple_forward.6} parent=0 // pred_check
    _
  $region3: #{ple_forward.6} parent=0 // pred_check_branch
    %13 = sbr.rel (0) target = $region5
  $region4: #{ple_forward.6} parent=0 // pred_region
    _
  $region5: #{ple_forward.6} parent=0 // pred_fallthru
    _
  // Predicated region
  $region6: #{ple_forward.6} parent=0 // pred_check
    _
  $region7: #{ple_forward.6} parent=0 // pred_check_branch
    %15 = sbr.rel (0) target = $region9
  $region8: #{ple_forward.6} parent=0 // pred_region
    _
  $region9: #{ple_forward.6} parent=0 // pred_fallthru
    _
  // Predicated region
  $region10: #{ple_forward.6} parent=0 // pred_check
    _
  $region11: #{ple_forward.6} parent=0 // pred_check_branch
    %17 = sbr.rel (0) target = $region13
  $region12: #{ple_forward.6} parent=0 // pred_region
    _
  $region13: #{ple_forward.6} parent=0 // pred_fallthru
    _
  // Predicated region
  $region14: #{ple_forward.6} parent=0 // pred_check
    _
  $region15: #{ple_forward.6} parent=0 // pred_check_branch
    %19 = sbr.rel (0) target = $region17
  $region16: #{ple_forward.6} parent=0 // pred_region
    _
  $region17: #{ple_forward.6} parent=0 // pred_fallthru
    _
  // Predicated region
  $region18: #{ple_forward.6} parent=0 // pred_check
    _
  $region19: #{ple_forward.6} parent=0 // pred_check_branch
    %21 = sbr.rel (0) target = $region21
  $region20: #{ple_forward.6} parent=0 // pred_region
    _
  $region21: #{ple_forward.6} parent=0 // pred_fallthru
    _
  // Predicated region
  $region22: #{ple_forward.6} parent=0 // pred_check
    _
  $region23: #{ple_forward.6} parent=0 // pred_check_branch
    %23 = sbr.rel (0) target = $region25
  $region24: #{ple_forward.6} parent=0 // pred_region
    _
  $region25: #{ple_forward.6} parent=0 // pred_fallthru
    _
  // Predicated region
  $region26: #{ple_forward.6} parent=0 // pred_check
    _
  $region27: #{ple_forward.6} parent=0 // pred_check_branch
    %25 = sbr.rel (0) target = $region29
  $region28: #{ple_forward.6} parent=0 // pred_region
    _
  $region29: #{ple_forward.6} parent=0 // pred_fallthru
    _
  %v26 = vld [vmem:[%s0] sm:$0xf]
  %v27 = vld [vmem:[%s1] sm:$0xff]
  %v28 = vld [vmem:[%s1 + $0x8] sm:$0xff]
  %v29 = vld [vmem:[%s1 + $0x10] sm:$0xff]
  %v30 = vld [vmem:[%s1 + $0x18] sm:$0xff]
  %v31 = vld [vmem:[%s1 + $0x20] sm:$0xff]
  %v32 = vld [vmem:[%s1 + $0x28] sm:$0xff]
  %v33 = vld [vmem:[%s1 + $0x30] sm:$0xff]
  %v34 = vld [vmem:[%s1 + $0x38] sm:$0xff]
  %v35 = vld [vmem:[%s1 + $0x40] sm:$0xff]
  %v36 = vld [vmem:[%s1 + $0x48] sm:$0xff]
  %v37 = vld [vmem:[%s1 + $0x50] sm:$0xff]
  %v38 = vld [vmem:[%s1 + $0x58] sm:$0xff]
  %v39 = vld [vmem:[%s2] sm:$0x3]
  %v41 = vlaneseq
  %v42 = vshrl.u32 %v41, 7
  %v43 = vsub.s32 0, %v42
  %v44 = vrot.slane %v39, %v43
  %v45 = vlaneseq
  %v46 = vshrl.u32 %v45, 7
  %v47 = vsub.s32 1, %v46
  %v48 = vrot.slane %v39, %v47
  %vm51 = vcmask 392192
  %v53 = vsel %vm51, %v26, 0
  %55 = vmatprep.subr.mxu0 %v28
  %56 = vmatpush1.msra.mxu0 %v27
  %57 = vmatprep.subr.mxu0 %v30
  %58 = vmatpush1.msra.mxu0 %v29
  %59 = vmatprep.subr.mxu0 %v32
  %60 = vmatpush1.msra.mxu0 %v31
  %61 = vmatprep.subr.mxu0 %v34
  %62 = vmatpush1.msra.mxu0 %v33
  %63 = vmatprep.subr.mxu0 %v36
  %64 = vmatpush1.msra.mxu0 %v35
  %65 = vmatprep.subr.mxu0 %v38
  %66 = vmatpush1.msra.mxu0 %v37
  %67 = vmatprep.subr.mxu0 0.0
  %68 = vmatpush1.msra.mxu0 0.0
  %69 = vmatprep.subr.mxu0 0.0
  %70 = vmatpush1.msra.mxu0 0.0
  %71 = vmatprep.subr.mxu0 0.0
  %72 = vmatpush1.msra.mxu0 0.0
  %73 = vmatprep.subr.mxu0 0.0
  %74 = vmatpush1.msra.mxu0 0.0
  %75 = vmatprep.subr.mxu0 0.0
  %76 = vmatpush1.msra.mxu0 0.0
  %77 = vmatprep.subr.mxu0 0.0
  %78 = vmatpush1.msra.mxu0 0.0
  %79 = vmatprep.subr.mxu0 0.0
  %80 = vmatpush1.msra.mxu0 0.0
  %81 = vmatprep.subr.mxu0 0.0
  %82 = vmatpush1.msra.mxu0 0.0
  %83 = vmatprep.subr.mxu0 0.0
  %84 = vmatpush1.msra.mxu0 0.0
  %85 = vmatprep.subr.mxu0 0.0
  %86 = vmatpush1.msra.mxu0 0.0
  %87 = vmatprep.subr.mxu0 0.0
  %88 = vmatpush1.msra.mxu0 0.0
  %89 = vmatprep.subr.mxu0 0.0
  %90 = vmatpush1.msra.mxu0 0.0
  %91 = vmatprep.subr.mxu0 0.0
  %92 = vmatpush1.msra.mxu0 0.0
  %93 = vmatprep.subr.mxu0 0.0
  %94 = vmatpush1.msra.mxu0 0.0
  %95 = vmatprep.subr.mxu0 0.0
  %96 = vmatpush1.msra.mxu0 0.0
  %97 = vmatprep.subr.mxu0 0.0
  %98 = vmatpush1.msra.mxu0 0.0
  %99 = vmatprep.subr.mxu0 0.0
  %100 = vmatpush1.msra.mxu0 0.0
  %101 = vmatprep.subr.mxu0 0.0
  %102 = vmatpush1.msra.mxu0 0.0
  %103 = vmatprep.subr.mxu0 0.0
  %104 = vmatpush1.msra.mxu0 0.0
  %105 = vmatprep.subr.mxu0 0.0
  %106 = vmatpush1.msra.mxu0 0.0
  %107 = vmatprep.subr.mxu0 0.0
  %108 = vmatpush1.msra.mxu0 0.0
  %109 = vmatprep.subr.mxu0 0.0
  %110 = vmatpush1.msra.mxu0 0.0
  %111 = vmatprep.subr.mxu0 0.0
  %112 = vmatpush1.msra.mxu0 0.0
  %113 = vmatprep.subr.mxu0 0.0
  %114 = vmatpush1.msra.mxu0 0.0
  %115 = vmatprep.subr.mxu0 0.0
  %116 = vmatpush1.msra.mxu0 0.0
  %117 = vmatprep.subr.mxu0 0.0
  %118 = vmatpush1.msra.mxu0 0.0
  %119 = vmatprep.mubr.f32.mxu0 0.0
  %120 = vmatmul.mubr.f32.gmra.mrb[0].mxu0 %v53
  %v121 = vpop.f32.mrb[0].mxu0
  %v122 = vadd.f32 %v44, %v121
  %v123 = vpop.f32.mrb[0].mxu0
  %v124 = vadd.f32 %v48, %v123
  %125 = vdwg.mxu0
  %v126 = vmax.f32 %v122, 0.0
  %v127 = vmax.f32 %v124, 0.0
  %v128 = vld [vmem:[%s3] sm:$0xff]
  %v129 = vld [vmem:[%s3 + $0x8] sm:$0xff]
  %v130 = vld [vmem:[%s3 + $0x10] sm:$0xff]
  %v131 = vld [vmem:[%s3 + $0x18] sm:$0xff]
  %v132 = vld [vmem:[%s3 + $0x20] sm:$0xff]
  %v133 = vld [vmem:[%s3 + $0x28] sm:$0xff]
  %v134 = vld [vmem:[%s3 + $0x30] sm:$0xff]
  %v135 = vld [vmem:[%s3 + $0x38] sm:$0xff]
  %v136 = vld [vmem:[%s3 + $0x40] sm:$0xff]
  %v137 = vld [vmem:[%s3 + $0x48] sm:$0xff]
  %v138 = vld [vmem:[%s3 + $0x50] sm:$0xff]
  %v139 = vld [vmem:[%s3 + $0x58] sm:$0xff]
  %v140 = vld [vmem:[%s3 + $0x60] sm:$0xff]
  %v141 = vld [vmem:[%s3 + $0x68] sm:$0xff]
  %v142 = vld [vmem:[%s3 + $0x70] sm:$0xff]
  %v143 = vld [vmem:[%s3 + $0x78] sm:$0xff]
  %v144 = vld [vmem:[%s3 + $0x80] sm:$0xff]
  %v145 = vld [vmem:[%s3 + $0x88] sm:$0xff]
  %v146 = vld [vmem:[%s3 + $0x90] sm:$0xff]
  %v147 = vld [vmem:[%s3 + $0x98] sm:$0xff]
  %v148 = vld [vmem:[%s3 + $0xa0] sm:$0xff]
  %v149 = vld [vmem:[%s3 + $0xa8] sm:$0xff]
  %v150 = vld [vmem:[%s3 + $0xb0] sm:$0xff]
  %v151 = vld [vmem:[%s3 + $0xb8] sm:$0xff]
  %v152 = vld [vmem:[%s3 + $0xc0] sm:$0xff]
  %v153 = vld [vmem:[%s3 + $0xc8] sm:$0xff]
  %v154 = vld [vmem:[%s3 + $0xd0] sm:$0xff]
  %v155 = vld [vmem:[%s3 + $0xd8] sm:$0xff]
  %v156 = vld [vmem:[%s3 + $0xe0] sm:$0xff]
  %v157 = vld [vmem:[%s3 + $0xe8] sm:$0xff]
  %v158 = vld [vmem:[%s3 + $0xf0] sm:$0xff]
  %v159 = vld [vmem:[%s3 + $0xf8] sm:$0xff]
  %v160 = vld [vmem:[%s3 + $0x100] sm:$0xff]
  %v161 = vld [vmem:[%s3 + $0x108] sm:$0xff]
  %v162 = vld [vmem:[%s3 + $0x110] sm:$0xff]
  %v163 = vld [vmem:[%s3 + $0x118] sm:$0xff]
  %v164 = vld [vmem:[%s3 + $0x120] sm:$0xff]
  %v165 = vld [vmem:[%s3 + $0x128] sm:$0xff]
  %v166 = vld [vmem:[%s3 + $0x130] sm:$0xff]
  %v167 = vld [vmem:[%s3 + $0x138] sm:$0xff]
  %v168 = vld [vmem:[%s3 + $0x140] sm:$0xff]
  %v169 = vld [vmem:[%s3 + $0x148] sm:$0xff]
  %v170 = vld [vmem:[%s3 + $0x150] sm:$0xff]
  %v171 = vld [vmem:[%s3 + $0x158] sm:$0xff]
  %v172 = vld [vmem:[%s3 + $0x160] sm:$0xff]
  %v173 = vld [vmem:[%s3 + $0x168] sm:$0xff]
  %v174 = vld [vmem:[%s3 + $0x170] sm:$0xff]
  %v175 = vld [vmem:[%s3 + $0x178] sm:$0xff]
  %v176 = vld [vmem:[%s4] sm:$0x3]
  %v178 = vlaneseq
  %v179 = vshrl.u32 %v178, 7
  %v180 = vsub.s32 0, %v179
  %v181 = vrot.slane %v176, %v180
  %v182 = vlaneseq
  %v183 = vshrl.u32 %v182, 7
  %v184 = vsub.s32 1, %v183
  %v185 = vrot.slane %v176, %v184
  %vm188 = vcmask 523264
  %v190 = vsel %vm188, %v127, 0
  %192 = vmatprep.subr.mxu0 %v129
  %193 = vmatpush1.msra.mxu0 %v128
  %194 = vmatprep.subr.mxu0 %v131
  %195 = vmatpush1.msra.mxu0 %v130
  %196 = vmatprep.subr.mxu0 %v133
  %197 = vmatpush1.msra.mxu0 %v132
  %198 = vmatprep.subr.mxu0 %v135
  %199 = vmatpush1.msra.mxu0 %v134
  %200 = vmatprep.subr.mxu0 %v137
  %201 = vmatpush1.msra.mxu0 %v136
  %202 = vmatprep.subr.mxu0 %v139
  %203 = vmatpush1.msra.mxu0 %v138
  %204 = vmatprep.subr.mxu0 %v141
  %205 = vmatpush1.msra.mxu0 %v140
  %206 = vmatprep.subr.mxu0 %v143
  %207 = vmatpush1.msra.mxu0 %v142
  %208 = vmatprep.subr.mxu0 %v145
  %209 = vmatpush1.msra.mxu0 %v144
  %210 = vmatprep.subr.mxu0 %v147
  %211 = vmatpush1.msra.mxu0 %v146
  %212 = vmatprep.subr.mxu0 %v149
  %213 = vmatpush1.msra.mxu0 %v148
  %214 = vmatprep.subr.mxu0 %v151
  %215 = vmatpush1.msra.mxu0 %v150
  %216 = vmatprep.subr.mxu0 %v153
  %217 = vmatpush1.msra.mxu0 %v152
  %218 = vmatprep.subr.mxu0 %v155
  %219 = vmatpush1.msra.mxu0 %v154
  %220 = vmatprep.subr.mxu0 %v157
  %221 = vmatpush1.msra.mxu0 %v156
  %222 = vmatprep.subr.mxu0 %v159
  %223 = vmatpush1.msra.mxu0 %v158
  %224 = vmatprep.subr.mxu0 %v161
  %225 = vmatpush1.msra.mxu0 %v160
  %226 = vmatprep.subr.mxu0 %v163
  %227 = vmatpush1.msra.mxu0 %v162
  %228 = vmatprep.subr.mxu0 %v165
  %229 = vmatpush1.msra.mxu0 %v164
  %230 = vmatprep.subr.mxu0 %v167
  %231 = vmatpush1.msra.mxu0 %v166
  %232 = vmatprep.subr.mxu0 %v169
  %233 = vmatpush1.msra.mxu0 %v168
  %234 = vmatprep.subr.mxu0 %v171
  %235 = vmatpush1.msra.mxu0 %v170
  %236 = vmatprep.subr.mxu0 %v173
  %237 = vmatpush1.msra.mxu0 %v172
  %238 = vmatprep.subr.mxu0 %v175
  %239 = vmatpush1.msra.mxu0 %v174
  %240 = vmatprep.subr.mxu0 0.0
  %241 = vmatpush1.msra.mxu0 0.0
  %242 = vmatprep.subr.mxu0 0.0
  %243 = vmatpush1.msra.mxu0 0.0
  %244 = vmatprep.subr.mxu0 0.0
  %245 = vmatpush1.msra.mxu0 0.0
  %246 = vmatprep.subr.mxu0 0.0
  %247 = vmatpush1.msra.mxu0 0.0
  %248 = vmatprep.subr.mxu0 0.0
  %249 = vmatpush1.msra.mxu0 0.0
  %250 = vmatprep.subr.mxu0 0.0
  %251 = vmatpush1.msra.mxu0 0.0
  %252 = vmatprep.subr.mxu0 0.0
  %253 = vmatpush1.msra.mxu0 0.0
  %254 = vmatprep.subr.mxu0 0.0
  %255 = vmatpush1.msra.mxu0 0.0
  %256 = vmatprep.mubr.f32.mxu0 %v190
  %257 = vmatmul.mubr.f32.gmra.mrb[0].mxu0 %v126
  %v258 = vpop.f32.mrb[0].mxu0
  %v259 = vadd.f32 %v181, %v258
  %v260 = vpop.f32.mrb[0].mxu0
  %v261 = vadd.f32 %v185, %v260
  %262 = vdwg.mxu0
  %v263 = vmax.f32 %v259, 0.0
  %v264 = vmax.f32 %v261, 0.0
  %v265 = vld [vmem:[%s5] sm:$0xff]
  %v266 = vld [vmem:[%s5 + $0x8] sm:$0xff]
  %v267 = vld [vmem:[%s5 + $0x10] sm:$0xff]
  %v268 = vld [vmem:[%s5 + $0x18] sm:$0xff]
  %v269 = vld [vmem:[%s5 + $0x20] sm:$0xff]
  %v270 = vld [vmem:[%s5 + $0x28] sm:$0xff]
  %v271 = vld [vmem:[%s5 + $0x30] sm:$0xff]
  %v272 = vld [vmem:[%s5 + $0x38] sm:$0xff]
  %v273 = vld [vmem:[%s5 + $0x40] sm:$0xff]
  %v274 = vld [vmem:[%s5 + $0x48] sm:$0xff]
  %v275 = vld [vmem:[%s5 + $0x50] sm:$0xff]
  %v276 = vld [vmem:[%s5 + $0x58] sm:$0xff]
  %v277 = vld [vmem:[%s5 + $0x60] sm:$0xff]
  %v278 = vld [vmem:[%s5 + $0x68] sm:$0xff]
  %v279 = vld [vmem:[%s5 + $0x70] sm:$0xff]
  %v280 = vld [vmem:[%s5 + $0x78] sm:$0xff]
  %v281 = vld [vmem:[%s5 + $0x80] sm:$0xff]
  %v282 = vld [vmem:[%s5 + $0x88] sm:$0xff]
  %v283 = vld [vmem:[%s5 + $0x90] sm:$0xff]
  %v284 = vld [vmem:[%s5 + $0x98] sm:$0xff]
  %v285 = vld [vmem:[%s5 + $0xa0] sm:$0xff]
  %v286 = vld [vmem:[%s5 + $0xa8] sm:$0xff]
  %v287 = vld [vmem:[%s5 + $0xb0] sm:$0xff]
  %v288 = vld [vmem:[%s5 + $0xb8] sm:$0xff]
  %v289 = vld [vmem:[%s6] sm:$0x1]
  %v291 = vlaneseq
  %v292 = vshrl.u32 %v291, 7
  %v293 = vsub.s32 0, %v292
  %v294 = vrot.slane %v289, %v293
  %v297 = vsel %vm188, %v264, 0
  %299 = vmatprep.subr.mxu0 0.0
  %300 = vmatpush1.msra.mxu0 %v265
  %301 = vmatprep.subr.mxu0 0.0
  %302 = vmatpush1.msra.mxu0 %v266
  %303 = vmatprep.subr.mxu0 0.0
  %304 = vmatpush1.msra.mxu0 %v267
  %305 = vmatprep.subr.mxu0 0.0
  %306 = vmatpush1.msra.mxu0 %v268
  %307 = vmatprep.subr.mxu0 0.0
  %308 = vmatpush1.msra.mxu0 %v269
  %309 = vmatprep.subr.mxu0 0.0
  %310 = vmatpush1.msra.mxu0 %v270
  %311 = vmatprep.subr.mxu0 0.0
  %312 = vmatpush1.msra.mxu0 %v271
  %313 = vmatprep.subr.mxu0 0.0
  %314 = vmatpush1.msra.mxu0 %v272
  %315 = vmatprep.subr.mxu0 0.0
  %316 = vmatpush1.msra.mxu0 %v273
  %317 = vmatprep.subr.mxu0 0.0
  %318 = vmatpush1.msra.mxu0 %v274
  %319 = vmatprep.subr.mxu0 0.0
  %320 = vmatpush1.msra.mxu0 %v275
  %321 = vmatprep.subr.mxu0 0.0
  %322 = vmatpush1.msra.mxu0 %v276
  %323 = vmatprep.subr.mxu0 0.0
  %324 = vmatpush1.msra.mxu0 %v277
  %325 = vmatprep.subr.mxu0 0.0
  %326 = vmatpush1.msra.mxu0 %v278
  %327 = vmatprep.subr.mxu0 0.0
  %328 = vmatpush1.msra.mxu0 %v279
  %329 = vmatprep.subr.mxu0 0.0
  %330 = vmatpush1.msra.mxu0 %v280
  %331 = vmatprep.subr.mxu0 0.0
  %332 = vmatpush1.msra.mxu0 %v281
  %333 = vmatprep.subr.mxu0 0.0
  %334 = vmatpush1.msra.mxu0 %v282
  %335 = vmatprep.subr.mxu0 0.0
  %336 = vmatpush1.msra.mxu0 %v283
  %337 = vmatprep.subr.mxu0 0.0
  %338 = vmatpush1.msra.mxu0 %v284
  %339 = vmatprep.subr.mxu0 0.0
  %340 = vmatpush1.msra.mxu0 %v285
  %341 = vmatprep.subr.mxu0 0.0
  %342 = vmatpush1.msra.mxu0 %v286
  %343 = vmatprep.subr.mxu0 0.0
  %344 = vmatpush1.msra.mxu0 %v287
  %345 = vmatprep.subr.mxu0 0.0
  %346 = vmatpush1.msra.mxu0 %v288
  %347 = vmatprep.subr.mxu0 0.0
  %348 = vmatpush1.msra.mxu0 0.0
  %349 = vmatprep.subr.mxu0 0.0
  %350 = vmatpush1.msra.mxu0 0.0
  %351 = vmatprep.subr.mxu0 0.0
  %352 = vmatpush1.msra.mxu0 0.0
  %353 = vmatprep.subr.mxu0 0.0
  %354 = vmatpush1.msra.mxu0 0.0
  %355 = vmatprep.subr.mxu0 0.0
  %356 = vmatpush1.msra.mxu0 0.0
  %357 = vmatprep.subr.mxu0 0.0
  %358 = vmatpush1.msra.mxu0 0.0
  %359 = vmatprep.subr.mxu0 0.0
  %360 = vmatpush1.msra.mxu0 0.0
  %361 = vmatprep.subr.mxu0 0.0
  %362 = vmatpush1.msra.mxu0 0.0
  %363 = vmatprep.mubr.f32.mxu0 %v297
  %364 = vmatmul.mubr.f32.gmra.mrb[0].mxu0 %v263
  %v365 = vpop.f32.mrb[0].mxu0
  %v366 = vadd.f32 %v294, %v365
  %v367 = vpop.f32.mrb[0].mxu0
  %368 = vdwg.mxu0
  %vm369 = vcmask 552448
  %v370 = vsel %vm369, %v124, -inf
  %371 = vmax.xlane.f32.xlu0 %v370
  %v372 = vpop.xlane.xlu0 %371
  %v373 = vsub.f32 %v124, %v372
  %v374 = vmul.f32 %v373, 1.442695
  %v375 = vpow.pop %v374
  %377 = vrot.lane.b32.xlu0 %v375, 64
  %v378 = vpop.permute.xlu0 %377
  %vm380 = vcmask 27648
  %v381 = vsel %vm380, %v378, 0.0
  %382 = vadd.xlane.f32.xlu0 %v381
  %v383 = vpop.xlane.xlu0 %382
  %v384 = vrcp.pop %v383
  %v385 = vmul.f32 %v375, %v384
  %387 = vset.pattern.permute.xlu0 64
  %388 = vperm.xlu0 %387, %v385
  %v389 = vpop.permute.xlu0 %388
  %v391 = vmul.f32 %v389, %v366
  %v392 = vadd.f32 %v391, 0.0
  %393 = vset.pattern.permute.xlu0 65
  %394 = vperm.xlu0 %393, %v385
  %v395 = vpop.permute.xlu0 %394
  %v397 = vmul.f32 %v395, %v366
  %399 = vrot.lane.b32.xlu0 %v397, 112
  %v400 = vpop.permute.xlu0 %399
  %v402 = vadd.f32 %v392, %v400
  %403 = vset.pattern.permute.xlu0 66
  %404 = vperm.xlu0 %403, %v385
  %v405 = vpop.permute.xlu0 %404
  %v407 = vmul.f32 %v405, %v366
  %409 = vrot.lane.b32.xlu0 %v407, 64
  %v410 = vpop.permute.xlu0 %409
  %v412 = vadd.f32 %v402, %v410
  %413 = vset.pattern.permute.xlu0 67
  %414 = vperm.xlu0 %413, %v385
  %v415 = vpop.permute.xlu0 %414
  %v417 = vmul.f32 %v415, %v366
  %419 = vrot.lane.b32.xlu0 %v417, 48
  %v420 = vpop.permute.xlu0 %419
  %v422 = vadd.f32 %v412, %v420
  %vm423 = vcmask 585248
  %v424 = vsel %vm423, %v124, -inf
  %425 = vmax.xlane.f32.xlu0 %v424
  %v426 = vpop.xlane.xlu0 %425
  %v427 = vsub.f32 %v124, %v426
  %v428 = vmul.f32 %v427, 1.442695
  %v429 = vpow.pop %v428
  %431 = vrot.lane.b32.xlu0 %v429, 60
  %v432 = vpop.permute.xlu0 %431
  %v434 = vsel %vm380, %v432, 0.0
  %435 = vadd.xlane.f32.xlu0 %v434
  %v436 = vpop.xlane.xlu0 %435
  %v437 = vrcp.pop %v436
  %v438 = vmul.f32 %v429, %v437
  %440 = vset.pattern.permute.xlu0 68
  %441 = vperm.xlu0 %440, %v438
  %v442 = vpop.permute.xlu0 %441
  %v444 = vmul.f32 %v442, %v366
  %v445 = vadd.f32 %v444, 0.0
  %446 = vset.pattern.permute.xlu0 69
  %447 = vperm.xlu0 %446, %v438
  %v448 = vpop.permute.xlu0 %447
  %v450 = vmul.f32 %v448, %v366
  %452 = vrot.lane.b32.xlu0 %v450, 112
  %v453 = vpop.permute.xlu0 %452
  %v455 = vadd.f32 %v445, %v453
  %456 = vset.pattern.permute.xlu0 70
  %457 = vperm.xlu0 %456, %v438
  %v458 = vpop.permute.xlu0 %457
  %v460 = vmul.f32 %v458, %v366
  %462 = vrot.lane.b32.xlu0 %v460, 96
  %v463 = vpop.permute.xlu0 %462
  %v465 = vadd.f32 %v455, %v463
  %466 = vset.pattern.permute.xlu0 71
  %467 = vperm.xlu0 %466, %v438
  %v468 = vpop.permute.xlu0 %467
  %v470 = vmul.f32 %v468, %v366
  %472 = vrot.lane.b32.xlu0 %v470, 80
  %v473 = vpop.permute.xlu0 %472
  %v475 = vadd.f32 %v465, %v473
  %477 = vrot.lane.b32.xlu0 %v475, 112
  %v478 = vpop.permute.xlu0 %477
  %vm480 = vcmask 130048
  %v481 = vsel %vm480, %v422, %v478
  %vm482 = vcmask 257024
  %483 = vst.msk [vmem:[%s7] sm:$0xf] %vm482, %v481
  // Predicated region
  $region30: #{ple_forward.6} parent=0 // pred_check
    _
  $region31: #{ple_forward.6} parent=0 // pred_check_branch
    %485 = sbr.rel (0) target = $region33
  $region32: #{ple_forward.6} parent=0 // pred_region
    _
  $region33: #{ple_forward.6} parent=0 // pred_fallthru
    _
  // Predicated region
  $region34: #{ple_forward.6} parent=0 // pred_check
    _
  $region35: #{ple_forward.6} parent=0 // pred_check_branch
    %487 = sbr.rel (0) target = $region37
  $region36: #{ple_forward.6} parent=0 // pred_region
    _
  $region37: #{ple_forward.6} parent=0 // pred_fallthru
    _

// kernel: ple_forward.4
$region0: #{ple_forward.4}
  #allocation0 [shape = 'u32[]', space=smem, size = 0x4, offset = 0x4, fixed_abs, tag = 'smem constant byte address 0x4 - core index']
  #allocation1 [shape = 'u32[144,128]{1,0:T(1,128)}', space=vmem, size = 0x12000, scoped, tag = 'internal scratch']
  %s0 = inlined_call_operand.vmem [shape: f32[4,20], index: 0, kind: input, shape index: {}]
  %s1 = inlined_call_operand.hbm [shape: f32[20,206], index: 1, kind: input, shape index: {}]
  %s2 = inlined_call_operand.vmem [shape: f32[1,206], index: 2, kind: input, shape index: {}]
  %s3 = inlined_call_operand.hbm [shape: f32[192,192], index: 3, kind: input, shape index: {}]
  %s4 = inlined_call_operand.vmem [shape: f32[1,192], index: 4, kind: input, shape index: {}]
  %s5 = inlined_call_operand.vmem [shape: f32[192,96], index: 5, kind: input, shape index: {}]
  %s6 = inlined_call_operand.vmem [shape: f32[1,96], index: 6, kind: input, shape index: {}]
  %s7 = inlined_call_operand.vmem [shape: f32[4,48], index: 7, kind: output, shape index: {}]
  %s8 = sld [smem:[#allocation0]]
  $region46: #{ple_forward.4} parent=0
    _
  %s10 = ssub.s32 1, %s8
  %s11 = scalar_select 0, %s10, %s8
  $region1: #{ple_forward.4} parent=0
    #allocation2 [shape = 'u8[24576]{0}', space=vmem, size = 0x6000, scoped, tag = 'input window, operand 1, single buffered']
    #allocation3 [shape = 's32[1]{0}', space=sflag, size = 0x4, scoped, tag = 'scoped memory for ple_forward.4']
    #allocation4 [shape = 'u8[196608]{0}', space=vmem, size = 0x30000, scoped, tag = 'input window, operand 3, single buffered']
    #allocation5 [shape = 's32[1]{0}', space=sflag, size = 0x4, scoped, tag = 'scoped memory for ple_forward.4']
    %12 = vsyncpa [#allocation3], 0
    %13 = vsyncpa [#allocation5], 0
    // Predicated region
    $region2: #{ple_forward.4} parent=1 // pred_check
      _
    $region3: #{ple_forward.4} parent=1 // pred_check_branch
      %15 = sbr.rel (0) target = $region5
    $region4: #{ple_forward.4} parent=1 // pred_region
      _
    $region5: #{ple_forward.4} parent=1 // pred_fallthru
      _
    // Predicated region
    $region6: #{ple_forward.4} parent=1 // pred_check
      _
    $region7: #{ple_forward.4} parent=1 // pred_check_branch
      %17 = sbr.rel (0) target = $region9
    $region8: #{ple_forward.4} parent=1 // pred_region
      %s19 = ssub.s32 768, 768
      %20 = vsyncadd [#allocation3], %s19
      %s21 = sshll.u32 [#allocation2], 4
      %s22 = int_to_ptr.vmem [resolvable:$true] %s21
      %27 = dma.hbm_to_vmem [thread:$0]  %s1, 768, %s22, [#allocation3], 256, 256, 16
    $region9: #{ple_forward.4} parent=1 // pred_fallthru
      _
    // Predicated region
    $region10: #{ple_forward.4} parent=1 // pred_check
      _
    $region11: #{ple_forward.4} parent=1 // pred_check_branch
      %29 = sbr.rel (0) target = $region13
    $region12: #{ple_forward.4} parent=1 // pred_region
      _
    $region13: #{ple_forward.4} parent=1 // pred_fallthru
      _
    // Predicated region
    $region14: #{ple_forward.4} parent=1 // pred_check
      _
    $region15: #{ple_forward.4} parent=1 // pred_check_branch
      %31 = sbr.rel (0) target = $region17
    $region16: #{ple_forward.4} parent=1 // pred_region
      %s33 = ssub.s32 6144, 6144
      %34 = vsyncadd [#allocation5], %s33
      %s35 = sshll.u32 [#allocation4], 4
      %s36 = int_to_ptr.vmem [resolvable:$true] %s35
      %41 = dma.hbm_to_vmem [thread:$0]  %s3, 6144, %s36, [#allocation5], 256, 256, 16
    $region17: #{ple_forward.4} parent=1 // pred_fallthru
      _
    // Predicated region
    $region18: #{ple_forward.4} parent=1 // pred_check
      _
    $region19: #{ple_forward.4} parent=1 // pred_check_branch
      %43 = sbr.rel (0) target = $region21
    $region20: #{ple_forward.4} parent=1 // pred_region
      _
    $region21: #{ple_forward.4} parent=1 // pred_fallthru
      _
    // Predicated region
    $region22: #{ple_forward.4} parent=1 // pred_check
      _
    $region23: #{ple_forward.4} parent=1 // pred_check_branch
      %45 = sbr.rel (0) target = $region25
    $region24: #{ple_forward.4} parent=1 // pred_region
      _
    $region25: #{ple_forward.4} parent=1 // pred_fallthru
      _
    // Predicated region
    $region26: #{ple_forward.4} parent=1 // pred_check
      _
    $region27: #{ple_forward.4} parent=1 // pred_check_branch
      %47 = sbr.rel (0) target = $region29
    $region28: #{ple_forward.4} parent=1 // pred_region
      _
    $region29: #{ple_forward.4} parent=1 // pred_fallthru
      _
    // Predicated region
    $region30: #{ple_forward.4} parent=1 // pred_check
      _
    $region31: #{ple_forward.4} parent=1 // pred_check_branch
      %49 = sbr.rel (0) target = $region33
    $region32: #{ple_forward.4} parent=1 // pred_region
      %50 = dma.done [#allocation3], 768
    $region33: #{ple_forward.4} parent=1 // pred_fallthru
      _
    // Predicated region
    $region34: #{ple_forward.4} parent=1 // pred_check
      _
    $region35: #{ple_forward.4} parent=1 // pred_check_branch
      %52 = sbr.rel (0) target = $region37
    $region36: #{ple_forward.4} parent=1 // pred_region
      %53 = dma.done [#allocation5], 6144
    $region37: #{ple_forward.4} parent=1 // pred_fallthru
      _
    %v54 = vld [vmem:[%s0] sm:$0xf]
    %v55 = vld [vmem:[#allocation2] sm:$0xff]
    %v56 = vld [vmem:[#allocation2 + $0x8] sm:$0xff]
    %v57 = vld [vmem:[#allocation2 + $0x10] sm:$0xff]
    %v58 = vld [vmem:[#allocation2 + $0x18] sm:$0xff]
    %v59 = vld [vmem:[#allocation2 + $0x20] sm:$0xf]
    %v60 = vld [vmem:[#allocation2 + $0x28] sm:$0xf]
    %v61 = vld [vmem:[%s2] sm:$0x3]
    %v63 = vlaneseq
    %v64 = vshrl.u32 %v63, 7
    %v65 = vsub.s32 0, %v64
    %v66 = vrot.slane %v61, %v65
    %v67 = vlaneseq
    %v68 = vshrl.u32 %v67, 7
    %v69 = vsub.s32 1, %v68
    %v70 = vrot.slane %v61, %v69
    %vm73 = vcmask 162816
    %v75 = vsel %vm73, %v54, 0
    %vm77 = vcmask 1043456
    %v79 = vsel %vm77, %v59, 0
    %v82 = vsel %vm77, %v60, 0
    %84 = vmatprep.subr.mxu0 %v56
    %85 = vmatpush1.msra.mxu0 %v55
    %86 = vmatprep.subr.mxu0 %v58
    %87 = vmatpush1.msra.mxu0 %v57
    %88 = vmatprep.subr.mxu0 %v82
    %89 = vmatpush1.msra.mxu0 %v79
    %90 = vmatprep.subr.mxu0 0.0
    %91 = vmatpush1.msra.mxu0 0.0
    %92 = vmatprep.subr.mxu0 0.0
    %93 = vmatpush1.msra.mxu0 0.0
    %94 = vmatprep.subr.mxu0 0.0
    %95 = vmatpush1.msra.mxu0 0.0
    %96 = vmatprep.subr.mxu0 0.0
    %97 = vmatpush1.msra.mxu0 0.0
    %98 = vmatprep.subr.mxu0 0.0
    %99 = vmatpush1.msra.mxu0 0.0
    %100 = vmatprep.subr.mxu0 0.0
    %101 = vmatpush1.msra.mxu0 0.0
    %102 = vmatprep.subr.mxu0 0.0
    %103 = vmatpush1.msra.mxu0 0.0
    %104 = vmatprep.subr.mxu0 0.0
    %105 = vmatpush1.msra.mxu0 0.0
    %106 = vmatprep.subr.mxu0 0.0
    %107 = vmatpush1.msra.mxu0 0.0
    %108 = vmatprep.subr.mxu0 0.0
    %109 = vmatpush1.msra.mxu0 0.0
    %110 = vmatprep.subr.mxu0 0.0
    %111 = vmatpush1.msra.mxu0 0.0
    %112 = vmatprep.subr.mxu0 0.0
    %113 = vmatpush1.msra.mxu0 0.0
    %114 = vmatprep.subr.mxu0 0.0
    %115 = vmatpush1.msra.mxu0 0.0
    %116 = vmatprep.subr.mxu0 0.0
    %117 = vmatpush1.msra.mxu0 0.0
    %118 = vmatprep.subr.mxu0 0.0
    %119 = vmatpush1.msra.mxu0 0.0
    %120 = vmatprep.subr.mxu0 0.0
    %121 = vmatpush1.msra.mxu0 0.0
    %122 = vmatprep.subr.mxu0 0.0
    %123 = vmatpush1.msra.mxu0 0.0
    %124 = vmatprep.subr.mxu0 0.0
    %125 = vmatpush1.msra.mxu0 0.0
    %126 = vmatprep.subr.mxu0 0.0
    %127 = vmatpush1.msra.mxu0 0.0
    %128 = vmatprep.subr.mxu0 0.0
    %129 = vmatpush1.msra.mxu0 0.0
    %130 = vmatprep.subr.mxu0 0.0
    %131 = vmatpush1.msra.mxu0 0.0
    %132 = vmatprep.subr.mxu0 0.0
    %133 = vmatpush1.msra.mxu0 0.0
    %134 = vmatprep.subr.mxu0 0.0
    %135 = vmatpush1.msra.mxu0 0.0
    %136 = vmatprep.subr.mxu0 0.0
    %137 = vmatpush1.msra.mxu0 0.0
    %138 = vmatprep.subr.mxu0 0.0
    %139 = vmatpush1.msra.mxu0 0.0
    %140 = vmatprep.subr.mxu0 0.0
    %141 = vmatpush1.msra.mxu0 0.0
    %142 = vmatprep.subr.mxu0 0.0
    %143 = vmatpush1.msra.mxu0 0.0
    %144 = vmatprep.subr.mxu0 0.0
    %145 = vmatpush1.msra.mxu0 0.0
    %146 = vmatprep.subr.mxu0 0.0
    %147 = vmatpush1.msra.mxu0 0.0
    %148 = vmatprep.mubr.f32.mxu0 0.0
    %149 = vmatmul.mubr.f32.gmra.mrb[0].mxu0 %v75
    %v150 = vpop.f32.mrb[0].mxu0
    %v151 = vadd.f32 %v66, %v150
    %v152 = vpop.f32.mrb[0].mxu0
    %v153 = vadd.f32 %v70, %v152
    %154 = vdwg.mxu0
    %v155 = vmax.f32 %v151, 0.0
    %v156 = vmax.f32 %v153, 0.0
    %v157 = vld [vmem:[#allocation4] sm:$0xff]
    %v158 = vld [vmem:[#allocation4 + $0x8] sm:$0xff]
    %v159 = vld [vmem:[#allocation4 + $0x10] sm:$0xff]
    %v160 = vld [vmem:[#allocation4 + $0x18] sm:$0xff]
    %v161 = vld [vmem:[#allocation4 + $0x20] sm:$0xff]
    %v162 = vld [vmem:[#allocation4 + $0x28] sm:$0xff]
    %v163 = vld [vmem:[#allocation4 + $0x30] sm:$0xff]
    %v164 = vld [vmem:[#allocation4 + $0x38] sm:$0xff]
    %v165 = vld [vmem:[#allocation4 + $0x40] sm:$0xff]
    %v166 = vld [vmem:[#allocation4 + $0x48] sm:$0xff]
    %v167 = vld [vmem:[#allocation4 + $0x50] sm:$0xff]
    %v168 = vld [vmem:[#allocation4 + $0x58] sm:$0xff]
    %v169 = vld [vmem:[#allocation4 + $0x60] sm:$0xff]
    %v170 = vld [vmem:[#allocation4 + $0x68] sm:$0xff]
    %v171 = vld [vmem:[#allocation4 + $0x70] sm:$0xff]
    %v172 = vld [vmem:[#allocation4 + $0x78] sm:$0xff]
    %v173 = vld [vmem:[#allocation4 + $0x80] sm:$0xff]
    %v174 = vld [vmem:[#allocation4 + $0x88] sm:$0xff]
    %v175 = vld [vmem:[#allocation4 + $0x90] sm:$0xff]
    %v176 = vld [vmem:[#allocation4 + $0x98] sm:$0xff]
    %v177 = vld [vmem:[#allocation4 + $0xa0] sm:$0xff]
    %v178 = vld [vmem:[#allocation4 + $0xa8] sm:$0xff]
    %v179 = vld [vmem:[#allocation4 + $0xb0] sm:$0xff]
    %v180 = vld [vmem:[#allocation4 + $0xb8] sm:$0xff]
    %v181 = vld [vmem:[#allocation4 + $0xc0] sm:$0xff]
    %v182 = vld [vmem:[#allocation4 + $0xc8] sm:$0xff]
    %v183 = vld [vmem:[#allocation4 + $0xd0] sm:$0xff]
    %v184 = vld [vmem:[#allocation4 + $0xd8] sm:$0xff]
    %v185 = vld [vmem:[#allocation4 + $0xe0] sm:$0xff]
    %v186 = vld [vmem:[#allocation4 + $0xe8] sm:$0xff]
    %v187 = vld [vmem:[#allocation4 + $0xf0] sm:$0xff]
    %v188 = vld [vmem:[#allocation4 + $0xf8] sm:$0xff]
    %v189 = vld [vmem:[#allocation4 + $0x100] sm:$0xff]
    %v190 = vld [vmem:[#allocation4 + $0x108] sm:$0xff]
    %v191 = vld [vmem:[#allocation4 + $0x110] sm:$0xff]
    %v192 = vld [vmem:[#allocation4 + $0x118] sm:$0xff]
    %v193 = vld [vmem:[#allocation4 + $0x120] sm:$0xff]
    %v194 = vld [vmem:[#allocation4 + $0x128] sm:$0xff]
    %v195 = vld [vmem:[#allocation4 + $0x130] sm:$0xff]
    %v196 = vld [vmem:[#allocation4 + $0x138] sm:$0xff]
    %v197 = vld [vmem:[#allocation4 + $0x140] sm:$0xff]
    %v198 = vld [vmem:[#allocation4 + $0x148] sm:$0xff]
    %v199 = vld [vmem:[#allocation4 + $0x150] sm:$0xff]
    %v200 = vld [vmem:[#allocation4 + $0x158] sm:$0xff]
    %v201 = vld [vmem:[#allocation4 + $0x160] sm:$0xff]
    %v202 = vld [vmem:[#allocation4 + $0x168] sm:$0xff]
    %v203 = vld [vmem:[#allocation4 + $0x170] sm:$0xff]
    %v204 = vld [vmem:[#allocation4 + $0x178] sm:$0xff]
    %v205 = vld [vmem:[%s4] sm:$0x3]
    %v207 = vlaneseq
    %v208 = vshrl.u32 %v207, 7
    %v209 = vsub.s32 0, %v208
    %v210 = vrot.slane %v205, %v209
    %v211 = vlaneseq
    %v212 = vshrl.u32 %v211, 7
    %v213 = vsub.s32 1, %v212
    %v214 = vrot.slane %v205, %v213
    %vm217 = vcmask 523264
    %v219 = vsel %vm217, %v156, 0
    %221 = vmatprep.subr.mxu0 %v158
    %222 = vmatpush1.msra.mxu0 %v157
    %223 = vmatprep.subr.mxu0 %v160
    %224 = vmatpush1.msra.mxu0 %v159
    %225 = vmatprep.subr.mxu0 %v162
    %226 = vmatpush1.msra.mxu0 %v161
    %227 = vmatprep.subr.mxu0 %v164
    %228 = vmatpush1.msra.mxu0 %v163
    %229 = vmatprep.subr.mxu0 %v166
    %230 = vmatpush1.msra.mxu0 %v165
    %231 = vmatprep.subr.mxu0 %v168
    %232 = vmatpush1.msra.mxu0 %v167
    %233 = vmatprep.subr.mxu0 %v170
    %234 = vmatpush1.msra.mxu0 %v169
    %235 = vmatprep.subr.mxu0 %v172
    %236 = vmatpush1.msra.mxu0 %v171
    %237 = vmatprep.subr.mxu0 %v174
    %238 = vmatpush1.msra.mxu0 %v173
    %239 = vmatprep.subr.mxu0 %v176
    %240 = vmatpush1.msra.mxu0 %v175
    %241 = vmatprep.subr.mxu0 %v178
    %242 = vmatpush1.msra.mxu0 %v177
    %243 = vmatprep.subr.mxu0 %v180
    %244 = vmatpush1.msra.mxu0 %v179
    %245 = vmatprep.subr.mxu0 %v182
    %246 = vmatpush1.msra.mxu0 %v181
    %247 = vmatprep.subr.mxu0 %v184
    %248 = vmatpush1.msra.mxu0 %v183
    %249 = vmatprep.subr.mxu0 %v186
    %250 = vmatpush1.msra.mxu0 %v185
    %251 = vmatprep.subr.mxu0 %v188
    %252 = vmatpush1.msra.mxu0 %v187
    %253 = vmatprep.subr.mxu0 %v190
    %254 = vmatpush1.msra.mxu0 %v189
    %255 = vmatprep.subr.mxu0 %v192
    %256 = vmatpush1.msra.mxu0 %v191
    %257 = vmatprep.subr.mxu0 %v194
    %258 = vmatpush1.msra.mxu0 %v193
    %259 = vmatprep.subr.mxu0 %v196
    %260 = vmatpush1.msra.mxu0 %v195
    %261 = vmatprep.subr.mxu0 %v198
    %262 = vmatpush1.msra.mxu0 %v197
    %263 = vmatprep.subr.mxu0 %v200
    %264 = vmatpush1.msra.mxu0 %v199
    %265 = vmatprep.subr.mxu0 %v202
    %266 = vmatpush1.msra.mxu0 %v201
    %267 = vmatprep.subr.mxu0 %v204
    %268 = vmatpush1.msra.mxu0 %v203
    %269 = vmatprep.subr.mxu0 0.0
    %270 = vmatpush1.msra.mxu0 0.0
    %271 = vmatprep.subr.mxu0 0.0
    %272 = vmatpush1.msra.mxu0 0.0
    %273 = vmatprep.subr.mxu0 0.0
    %274 = vmatpush1.msra.mxu0 0.0
    %275 = vmatprep.subr.mxu0 0.0
    %276 = vmatpush1.msra.mxu0 0.0
    %277 = vmatprep.subr.mxu0 0.0
    %278 = vmatpush1.msra.mxu0 0.0
    %279 = vmatprep.subr.mxu0 0.0
    %280 = vmatpush1.msra.mxu0 0.0
    %281 = vmatprep.subr.mxu0 0.0
    %282 = vmatpush1.msra.mxu0 0.0
    %283 = vmatprep.subr.mxu0 0.0
    %284 = vmatpush1.msra.mxu0 0.0
    %285 = vmatprep.mubr.f32.mxu0 %v219
    %286 = vmatmul.mubr.f32.gmra.mrb[0].mxu0 %v155
    %v287 = vpop.f32.mrb[0].mxu0
    %v288 = vadd.f32 %v210, %v287
    %v289 = vpop.f32.mrb[0].mxu0
    %v290 = vadd.f32 %v214, %v289
    %291 = vdwg.mxu0
    %v292 = vmax.f32 %v288, 0.0
    %v293 = vmax.f32 %v290, 0.0
    %v294 = vld [vmem:[%s5] sm:$0xff]
    %v295 = vld [vmem:[%s5 + $0x8] sm:$0xff]
    %v296 = vld [vmem:[%s5 + $0x10] sm:$0xff]
    %v297 = vld [vmem:[%s5 + $0x18] sm:$0xff]
    %v298 = vld [vmem:[%s5 + $0x20] sm:$0xff]
    %v299 = vld [vmem:[%s5 + $0x28] sm:$0xff]
    %v300 = vld [vmem:[%s5 + $0x30] sm:$0xff]
    %v301 = vld [vmem:[%s5 + $0x38] sm:$0xff]
    %v302 = vld [vmem:[%s5 + $0x40] sm:$0xff]
    %v303 = vld [vmem:[%s5 + $0x48] sm:$0xff]
    %v304 = vld [vmem:[%s5 + $0x50] sm:$0xff]
    %v305 = vld [vmem:[%s5 + $0x58] sm:$0xff]
    %v306 = vld [vmem:[%s5 + $0x60] sm:$0xff]
    %v307 = vld [vmem:[%s5 + $0x68] sm:$0xff]
    %v308 = vld [vmem:[%s5 + $0x70] sm:$0xff]
    %v309 = vld [vmem:[%s5 + $0x78] sm:$0xff]
    %v310 = vld [vmem:[%s5 + $0x80] sm:$0xff]
    %v311 = vld [vmem:[%s5 + $0x88] sm:$0xff]
    %v312 = vld [vmem:[%s5 + $0x90] sm:$0xff]
    %v313 = vld [vmem:[%s5 + $0x98] sm:$0xff]
    %v314 = vld [vmem:[%s5 + $0xa0] sm:$0xff]
    %v315 = vld [vmem:[%s5 + $0xa8] sm:$0xff]
    %v316 = vld [vmem:[%s5 + $0xb0] sm:$0xff]
    %v317 = vld [vmem:[%s5 + $0xb8] sm:$0xff]
    %v318 = vld [vmem:[%s6] sm:$0x1]
    %v320 = vlaneseq
    %v321 = vshrl.u32 %v320, 7
    %v322 = vsub.s32 0, %v321
    %v323 = vrot.slane %v318, %v322
    %v326 = vsel %vm217, %v293, 0
    %328 = vmatprep.subr.mxu0 0.0
    %329 = vmatpush1.msra.mxu0 %v294
    %330 = vmatprep.subr.mxu0 0.0
    %331 = vmatpush1.msra.mxu0 %v295
    %332 = vmatprep.subr.mxu0 0.0
    %333 = vmatpush1.msra.mxu0 %v296
    %334 = vmatprep.subr.mxu0 0.0
    %335 = vmatpush1.msra.mxu0 %v297
    %336 = vmatprep.subr.mxu0 0.0
    %337 = vmatpush1.msra.mxu0 %v298
    %338 = vmatprep.subr.mxu0 0.0
    %339 = vmatpush1.msra.mxu0 %v299
    %340 = vmatprep.subr.mxu0 0.0
    %341 = vmatpush1.msra.mxu0 %v300
    %342 = vmatprep.subr.mxu0 0.0
    %343 = vmatpush1.msra.mxu0 %v301
    %344 = vmatprep.subr.mxu0 0.0
    %345 = vmatpush1.msra.mxu0 %v302
    %346 = vmatprep.subr.mxu0 0.0
    %347 = vmatpush1.msra.mxu0 %v303
    %348 = vmatprep.subr.mxu0 0.0
    %349 = vmatpush1.msra.mxu0 %v304
    %350 = vmatprep.subr.mxu0 0.0
    %351 = vmatpush1.msra.mxu0 %v305
    %352 = vmatprep.subr.mxu0 0.0
    %353 = vmatpush1.msra.mxu0 %v306
    %354 = vmatprep.subr.mxu0 0.0
    %355 = vmatpush1.msra.mxu0 %v307
    %356 = vmatprep.subr.mxu0 0.0
    %357 = vmatpush1.msra.mxu0 %v308
    %358 = vmatprep.subr.mxu0 0.0
    %359 = vmatpush1.msra.mxu0 %v309
    %360 = vmatprep.subr.mxu0 0.0
    %361 = vmatpush1.msra.mxu0 %v310
    %362 = vmatprep.subr.mxu0 0.0
    %363 = vmatpush1.msra.mxu0 %v311
    %364 = vmatprep.subr.mxu0 0.0
    %365 = vmatpush1.msra.mxu0 %v312
    %366 = vmatprep.subr.mxu0 0.0
    %367 = vmatpush1.msra.mxu0 %v313
    %368 = vmatprep.subr.mxu0 0.0
    %369 = vmatpush1.msra.mxu0 %v314
    %370 = vmatprep.subr.mxu0 0.0
    %371 = vmatpush1.msra.mxu0 %v315
    %372 = vmatprep.subr.mxu0 0.0
    %373 = vmatpush1.msra.mxu0 %v316
    %374 = vmatprep.subr.mxu0 0.0
    %375 = vmatpush1.msra.mxu0 %v317
    %376 = vmatprep.subr.mxu0 0.0
    %377 = vmatpush1.msra.mxu0 0.0
    %378 = vmatprep.subr.mxu0 0.0
    %379 = vmatpush1.msra.mxu0 0.0
    %380 = vmatprep.subr.mxu0 0.0
    %381 = vmatpush1.msra.mxu0 0.0
    %382 = vmatprep.subr.mxu0 0.0
    %383 = vmatpush1.msra.mxu0 0.0
    %384 = vmatprep.subr.mxu0 0.0
    %385 = vmatpush1.msra.mxu0 0.0
    %386 = vmatprep.subr.mxu0 0.0
    %387 = vmatpush1.msra.mxu0 0.0
    %388 = vmatprep.subr.mxu0 0.0
    %389 = vmatpush1.msra.mxu0 0.0
    %390 = vmatprep.subr.mxu0 0.0
    %391 = vmatpush1.msra.mxu0 0.0
    %392 = vmatprep.mubr.f32.mxu0 %v326
    %393 = vmatmul.mubr.f32.gmra.mrb[0].mxu0 %v292
    %v394 = vpop.f32.mrb[0].mxu0
    %v395 = vadd.f32 %v323, %v394
    %v396 = vpop.f32.mrb[0].mxu0
    %397 = vdwg.mxu0
    %vm398 = vcmask 552448
    %v399 = vsel %vm398, %v153, -inf
    %400 = vmax.xlane.f32.xlu0 %v399
    %v401 = vpop.xlane.xlu0 %400
    %v402 = vsub.f32 %v153, %v401
    %v403 = vmul.f32 %v402, 1.442695
    %v404 = vpow.pop %v403
    %406 = vrot.lane.b32.xlu0 %v404, 64
    %v407 = vpop.permute.xlu0 %406
    %vm409 = vcmask 27648
    %v410 = vsel %vm409, %v407, 0.0
    %411 = vadd.xlane.f32.xlu0 %v410
    %v412 = vpop.xlane.xlu0 %411
    %v413 = vrcp.pop %v412
    %v414 = vmul.f32 %v404, %v413
    %416 = vset.pattern.permute.xlu0 64
    %417 = vperm.xlu0 %416, %v414
    %v418 = vpop.permute.xlu0 %417
    %v420 = vmul.f32 %v418, %v395
    %v421 = vadd.f32 %v420, 0.0
    %422 = vset.pattern.permute.xlu0 65
    %423 = vperm.xlu0 %422, %v414
    %v424 = vpop.permute.xlu0 %423
    %v426 = vmul.f32 %v424, %v395
    %428 = vrot.lane.b32.xlu0 %v426, 112
    %v429 = vpop.permute.xlu0 %428
    %v431 = vadd.f32 %v421, %v429
    %432 = vset.pattern.permute.xlu0 66
    %433 = vperm.xlu0 %432, %v414
    %v434 = vpop.permute.xlu0 %433
    %v436 = vmul.f32 %v434, %v395
    %438 = vrot.lane.b32.xlu0 %v436, 64
    %v439 = vpop.permute.xlu0 %438
    %v441 = vadd.f32 %v431, %v439
    %442 = vset.pattern.permute.xlu0 67
    %443 = vperm.xlu0 %442, %v414
    %v444 = vpop.permute.xlu0 %443
    %v446 = vmul.f32 %v444, %v395
    %448 = vrot.lane.b32.xlu0 %v446, 48
    %v449 = vpop.permute.xlu0 %448
    %v451 = vadd.f32 %v441, %v449
    %vm452 = vcmask 585248
    %v453 = vsel %vm452, %v153, -inf
    %454 = vmax.xlane.f32.xlu0 %v453
    %v455 = vpop.xlane.xlu0 %454
    %v456 = vsub.f32 %v153, %v455
    %v457 = vmul.f32 %v456, 1.442695
    %v458 = vpow.pop %v457
    %460 = vrot.lane.b32.xlu0 %v458, 60
    %v461 = vpop.permute.xlu0 %460
    %v463 = vsel %vm409, %v461, 0.0
    %464 = vadd.xlane.f32.xlu0 %v463
    %v465 = vpop.xlane.xlu0 %464
    %v466 = vrcp.pop %v465
    %v467 = vmul.f32 %v458, %v466
    %469 = vset.pattern.permute.xlu0 68
    %470 = vperm.xlu0 %469, %v467
    %v471 = vpop.permute.xlu0 %470
    %v473 = vmul.f32 %v471, %v395
    %v474 = vadd.f32 %v473, 0.0
    %475 = vset.pattern.permute.xlu0 69
    %476 = vperm.xlu0 %475, %v467
    %v477 = vpop.permute.xlu0 %476
    %v479 = vmul.f32 %v477, %v395
    %481 = vrot.lane.b32.xlu0 %v479, 112
    %v482 = vpop.permute.xlu0 %481
    %v484 = vadd.f32 %v474, %v482
    %485 = vset.pattern.permute.xlu0 70
    %486 = vperm.xlu0 %485, %v467
    %v487 = vpop.permute.xlu0 %486
    %v489 = vmul.f32 %v487, %v395
    %491 = vrot.lane.b32.xlu0 %v489, 96
    %v492 = vpop.permute.xlu0 %491
    %v494 = vadd.f32 %v484, %v492
    %495 = vset.pattern.permute.xlu0 71
    %496 = vperm.xlu0 %495, %v467
    %v497 = vpop.permute.xlu0 %496
    %v499 = vmul.f32 %v497, %v395
    %501 = vrot.lane.b32.xlu0 %v499, 80
    %v502 = vpop.permute.xlu0 %501
    %v504 = vadd.f32 %v494, %v502
    %vm505 = vcmask 634432
    %v506 = vsel %vm505, %v153, -inf
    %507 = vmax.xlane.f32.xlu0 %v506
    %v508 = vpop.xlane.xlu0 %507
    %v509 = vsub.f32 %v153, %v508
    %v510 = vmul.f32 %v509, 1.442695
    %v511 = vpow.pop %v510
    %513 = vrot.lane.b32.xlu0 %v511, 56
    %v514 = vpop.permute.xlu0 %513
    %vm516 = vcmask 44032
    %v517 = vsel %vm516, %v514, 0.0
    %518 = vadd.xlane.f32.xlu0 %v517
    %v519 = vpop.xlane.xlu0 %518
    %v520 = vrcp.pop %v519
    %v521 = vmul.f32 %v511, %v520
    %523 = vset.pattern.permute.xlu0 72
    %524 = vperm.xlu0 %523, %v521
    %v525 = vpop.permute.xlu0 %524
    %v527 = vmul.f32 %v525, %v395
    %v528 = vadd.f32 %v527, 0.0
    %529 = vset.pattern.permute.xlu0 73
    %530 = vperm.xlu0 %529, %v521
    %v531 = vpop.permute.xlu0 %530
    %v533 = vmul.f32 %v531, %v395
    %535 = vrot.lane.b32.xlu0 %v533, 112
    %v536 = vpop.permute.xlu0 %535
    %v538 = vadd.f32 %v528, %v536
    %539 = vset.pattern.permute.xlu0 74
    %540 = vperm.xlu0 %539, %v521
    %v541 = vpop.permute.xlu0 %540
    %v543 = vmul.f32 %v541, %v395
    %545 = vrot.lane.b32.xlu0 %v543, 96
    %v546 = vpop.permute.xlu0 %545
    %v548 = vadd.f32 %v538, %v546
    %549 = vset.pattern.permute.xlu0 75
    %550 = vperm.xlu0 %549, %v521
    %v551 = vpop.permute.xlu0 %550
    %v553 = vmul.f32 %v551, %v395
    %555 = vrot.lane.b32.xlu0 %v553, 80
    %v556 = vpop.permute.xlu0 %555
    %v558 = vadd.f32 %v548, %v556
    %559 = vset.pattern.permute.xlu0 76
    %560 = vperm.xlu0 %559, %v521
    %v561 = vpop.permute.xlu0 %560
    %v563 = vmul.f32 %v561, %v395
    %565 = vrot.lane.b32.xlu0 %v563, 64
    %v566 = vpop.permute.xlu0 %565
    %v568 = vadd.f32 %v558, %v566
    %569 = vset.pattern.permute.xlu0 77
    %570 = vperm.xlu0 %569, %v521
    %v571 = vpop.permute.xlu0 %570
    %v573 = vmul.f32 %v571, %v395
    %575 = vrot.lane.b32.xlu0 %v573, 48
    %v576 = vpop.permute.xlu0 %575
    %v578 = vadd.f32 %v568, %v576
    %580 = vrot.lane.b32.xlu0 %v504, 112
    %v581 = vpop.permute.xlu0 %580
    %584 = vrot.lane.b32.xlu0 %v578, 32
    %v585 = vpop.permute.xlu0 %584
    %vm587 = vcmask 130048
    %v588 = vsel %vm587, %v451, %v581
    %vm589 = vcmask 261120
    %v590 = vsel %vm589, %v588, %v585
    %vm591 = vcmask 388096
    %592 = vst.msk [vmem:[%s7] sm:$0xf] %vm591, %v590
    // Predicated region
    $region38: #{ple_forward.4} parent=1 // pred_check
      _
    $region39: #{ple_forward.4} parent=1 // pred_check_branch
      %594 = sbr.rel (0) target = $region41
    $region40: #{ple_forward.4} parent=1 // pred_region
      _
    $region41: #{ple_forward.4} parent=1 // pred_fallthru
      _
    // Predicated region
    $region42: #{ple_forward.4} parent=1 // pred_check
      _
    $region43: #{ple_forward.4} parent=1 // pred_check_branch
      %596 = sbr.rel (0) target = $region45
    $region44: #{ple_forward.4} parent=1 // pred_region
      _
    $region45: #{ple_forward.4} parent=1 // pred_fallthru
      _
    %597 = vsyncpa [#allocation3], 1
    %598 = vsyncpa [#allocation5], 1

</llo_original>
